<compile_context>
chip_gen: v7x
topology: tpu7x:2x2x1
jax: 0.10.0
libtpu: 0.0.40
codegen_flags: <defaults>
</compile_context>

<pallas_src>
import functools

import jax
import jax.numpy as jnp
from jax.experimental import pallas as pl
from jax.experimental.pallas import tpu as pltpu


def _round_up(x, m):
    return (x + m - 1) // m * m


# ---------------------------------------------------------------------------
# fused kernel
# ---------------------------------------------------------------------------
def _causal_conv(src_ref, w_ref, b_ref, *, K, dilation, pad_rows, T):
    # src_ref: (pad_rows + T, Cp) f32 scratch; rows [0, pad_rows) are zero.
    # w_ref: (K*Cp, Cp) bf16 (tap-fused), b_ref: (1, Cp) f32.
    views = []
    for k in range(K):                       # static unroll over kernel taps
        s = (K - 1 - k) * dilation           # causal left-shift for this tap
        views.append(src_ref[pl.ds(pad_rows - s, T), :])
    slab = jnp.concatenate(views, axis=1) if K > 1 else views[0]  # (T, K*Cp)
    acc = jnp.dot(slab.astype(jnp.bfloat16), w_ref[...],
                  preferred_element_type=jnp.float32)
    return acc + b_ref[...]


def tcn_fused_kernel(*refs, layer_has_ds, K, T, L, pad_rows, Cp):
    # refs = x, [w1,b1,w2,b2(,wd,bd)] per layer, lin_w, lin_b, o, h_scr, t_scr
    idx = 0
    x_ref = refs[idx]; idx += 1
    layer_refs = []
    for has_ds in layer_has_ds:
        n = 6 if has_ds else 4
        layer_refs.append(refs[idx:idx + n]); idx += n
    lin_w_ref = refs[idx]; lin_b_ref = refs[idx + 1]; idx += 2
    o_ref = refs[idx]; idx += 1
    h_ref = refs[idx]; t_ref = refs[idx + 1]

    # zero the causal-padding rows once; they are never written afterwards
    zpad = jnp.zeros((pad_rows, Cp), jnp.float32)
    h_ref[pl.ds(0, pad_rows), :] = zpad
    t_ref[pl.ds(0, pad_rows), :] = zpad
    h_ref[pl.ds(pad_rows, T), :] = x_ref[...]

    for i, (has_ds, lrefs) in enumerate(zip(layer_has_ds, layer_refs)):
        dilation = 2 ** i
        if has_ds:
            w1_ref, b1_ref, w2_ref, b2_ref, wd_ref, bd_ref = lrefs
        else:
            w1_ref, b1_ref, w2_ref, b2_ref = lrefs

        h1 = jnp.maximum(
            _causal_conv(h_ref, w1_ref, b1_ref,
                         K=K, dilation=dilation, pad_rows=pad_rows, T=T), 0.0)
        t_ref[pl.ds(pad_rows, T), :] = h1
        h2 = jnp.maximum(
            _causal_conv(t_ref, w2_ref, b2_ref,
                         K=K, dilation=dilation, pad_rows=pad_rows, T=T), 0.0)

        x_cur = h_ref[pl.ds(pad_rows, T), :]
        if has_ds:
            res = jnp.dot(x_cur.astype(jnp.bfloat16), wd_ref[...],
                          preferred_element_type=jnp.float32) + bd_ref[...]
        else:
            res = x_cur
        h_ref[pl.ds(pad_rows, T), :] = jnp.maximum(h2 + res, 0.0)

    # linear head on the last L time steps only (fused, no HBM round-trip)
    tail = h_ref[pl.ds(pad_rows + T - L, L), :]
    o_ref[...] = (jnp.dot(tail.astype(jnp.bfloat16), lin_w_ref[...],
                          preferred_element_type=jnp.float32)
                  + lin_b_ref[...]).astype(o_ref.dtype)


# ---------------------------------------------------------------------------
# wrapper
# ---------------------------------------------------------------------------
def tcn_forward(x, params):
    # x: (B, T, input_size) f32  ->  (B, label_num, output_size) f32
    B, T, Cin = x.shape
    K = params["kernel_size"]
    blocks = params["blocks"]
    num_layers = len(blocks)
    L = params["label_num"]
    out_size = params["lin_w"].shape[1]

    # one common lane-padded channel width for every layer
    chans = [Cin] + [blk["w1"].shape[2] for blk in blocks]
    Cp = _round_up(max(chans), 128)
    Op = _round_up(out_size, 128)

    # sublane zero-padding above the sequence, covering the largest causal shift
    max_shift = (K - 1) * (2 ** (num_layers - 1))
    pad_rows = max(_round_up(max_shift, 8), 8)

    xp = jnp.pad(x, ((0, 0), (0, 0), (0, Cp - Cin)))

    args = [xp]
    in_specs = [pl.BlockSpec((None, T, Cp), lambda b: (b, 0, 0))]

    def add_arg(a):
        args.append(a)
        in_specs.append(pl.BlockSpec(a.shape, lambda b, nd=a.ndim: (0,) * nd))

    layer_has_ds = []
    for blk in blocks:
        Kc, ci, co = blk["w1"].shape
        w1 = jnp.pad(blk["w1"], ((0, 0), (0, Cp - ci), (0, Cp - co)))
        w1 = w1.reshape(Kc * Cp, Cp).astype(jnp.bfloat16)
        b1 = jnp.pad(blk["b1"], ((0, 0), (0, Cp - co)))
        w2 = jnp.pad(blk["w2"], ((0, 0), (0, Cp - co), (0, Cp - co)))
        w2 = w2.reshape(Kc * Cp, Cp).astype(jnp.bfloat16)
        b2 = jnp.pad(blk["b2"], ((0, 0), (0, Cp - co)))
        add_arg(w1); add_arg(b1); add_arg(w2); add_arg(b2)
        has_ds = "wd" in blk
        layer_has_ds.append(has_ds)
        if has_ds:
            wd = jnp.pad(blk["wd"], ((0, Cp - ci), (0, Cp - co))).astype(jnp.bfloat16)
            bd = jnp.pad(blk["bd"], ((0, 0), (0, Cp - co)))
            add_arg(wd); add_arg(bd)

    co_last = blocks[-1]["w1"].shape[2]
    lin_w = jnp.pad(params["lin_w"],
                    ((0, Cp - co_last), (0, Op - out_size))).astype(jnp.bfloat16)
    lin_b = jnp.pad(params["lin_b"], ((0, 0), (0, Op - out_size)))
    add_arg(lin_w); add_arg(lin_b)

    kernel = functools.partial(
        tcn_fused_kernel,
        layer_has_ds=tuple(layer_has_ds),
        K=K, T=T, L=L, pad_rows=pad_rows, Cp=Cp)

    y = pl.pallas_call(
        kernel,
        out_shape=jax.ShapeDtypeStruct((B, L, Op), jnp.float32),
        grid=(B,),
        in_specs=in_specs,
        out_specs=pl.BlockSpec((None, L, Op), lambda b: (b, 0, 0)),
        scratch_shapes=[pltpu.VMEM((pad_rows + T, Cp), jnp.float32),
                        pltpu.VMEM((pad_rows + T, Cp), jnp.float32)],
        compiler_params=pltpu.CompilerParams(
            dimension_semantics=("parallel",)),
    )(*args)
    return y[:, :, :out_size]


# ---------------------------------------------------------------------------
# deterministic synthetic parameters (shapes follow the PyTorch __init__)
# ---------------------------------------------------------------------------
def init_params(key, input_size, output_size, num_channels, kernel_size, label_extra):
    params = {"blocks": [], "label_num": label_extra + 1, "kernel_size": kernel_size}
    keys = jax.random.split(key, 6 * len(num_channels) + 2)
    ki = 0
    in_c = input_size
    for out_c in num_channels:
        blk = {}
        blk["w1"] = 0.01 * jax.random.normal(keys[ki], (kernel_size, in_c, out_c), jnp.float32); ki += 1
        blk["b1"] = 0.01 * jax.random.normal(keys[ki], (1, out_c), jnp.float32); ki += 1
        blk["w2"] = 0.01 * jax.random.normal(keys[ki], (kernel_size, out_c, out_c), jnp.float32); ki += 1
        blk["b2"] = 0.01 * jax.random.normal(keys[ki], (1, out_c), jnp.float32); ki += 1
        if in_c != out_c:   # downsample = Conv1d(in_c, out_c, 1)
            blk["wd"] = 0.01 * jax.random.normal(keys[ki], (in_c, out_c), jnp.float32); ki += 1
            blk["bd"] = 0.01 * jax.random.normal(keys[ki], (1, out_c), jnp.float32); ki += 1
        params["blocks"].append(blk)
        in_c = out_c
    params["lin_w"] = 0.01 * jax.random.normal(keys[ki], (in_c, output_size), jnp.float32); ki += 1
    params["lin_b"] = 0.01 * jax.random.normal(keys[ki], (1, output_size), jnp.float32)
    return params


# ---------------------------------------------------------------------------
# pure-JAX f32 reference (same math, no Pallas) for correctness
# ---------------------------------------------------------------------------
def _ref_block(x, blk, dilation):
    K = blk["w1"].shape[0]

    def conv(h, w, b):
        T = h.shape[1]
        out = jnp.zeros((h.shape[0], T, w.shape[2]), jnp.float32)
        for k in range(K):
            s = (K - 1 - k) * dilation
            hk = jnp.pad(h, ((0, 0), (s, 0), (0, 0)))[:, :T, :]
            out = out + jnp.einsum("btc,co->bto", hk, w[k])
        return out + b

    h1 = jax.nn.relu(conv(x, blk["w1"], blk["b1"]))
    h2 = jax.nn.relu(conv(h1, blk["w2"], blk["b2"]))
    res = x if "wd" not in blk else jnp.einsum("btc,co->bto", x, blk["wd"]) + blk["bd"]
    return jax.nn.relu(h2 + res)


def ref_forward(x, params):
    h = x
    for i, blk in enumerate(params["blocks"]):
        h = _ref_block(h, blk, 2 ** i)
    L = params["label_num"]
    return jnp.einsum("btc,co->bto", h[:, -L:, :], params["lin_w"]) + params["lin_b"]


# ---------------------------------------------------------------------------
if __name__ == "__main__":
    key = jax.random.PRNGKey(0)
    pkey, xkey = jax.random.split(key)

    B, T = 2, 16
    input_size, output_size = 4, 5
    num_channels = [8, 8]
    kernel_size = 2
    label_extra = 3          # -> label_num = 4

    params = init_params(pkey, input_size, output_size, num_channels,
                         kernel_size, label_extra)
    x = jax.random.normal(xkey, (B, T, input_size), jnp.float32)

    y = tcn_forward(x, params)
    jax.block_until_ready(y)

    assert y.shape == (B, label_extra + 1, output_size), y.shape
    y_ref = ref_forward(x, params)
    # bf16 matmul inputs (f32 accumulation) -> loosened tolerance vs f32 ref.
    assert jnp.allclose(y, y_ref, atol=2e-3, rtol=2e-2), (
        float(jnp.max(jnp.abs(y - y_ref))), y, y_ref)

    print("KERNEL_OK")
</pallas_src>

<mosaic_0001>
module attributes {stable_mosaic.version = 11 : i64} {
  func.func @tcn_fused_kernel(%arg0: i32, %arg1: memref<1x16x128xf32, #tpu.memory_space<vmem>>, %arg2: memref<256x128xbf16, #tpu.memory_space<vmem>>, %arg3: memref<1x128xf32, #tpu.memory_space<vmem>>, %arg4: memref<256x128xbf16, #tpu.memory_space<vmem>>, %arg5: memref<1x128xf32, #tpu.memory_space<vmem>>, %arg6: memref<128x128xbf16, #tpu.memory_space<vmem>>, %arg7: memref<1x128xf32, #tpu.memory_space<vmem>>, %arg8: memref<256x128xbf16, #tpu.memory_space<vmem>>, %arg9: memref<1x128xf32, #tpu.memory_space<vmem>>, %arg10: memref<256x128xbf16, #tpu.memory_space<vmem>>, %arg11: memref<1x128xf32, #tpu.memory_space<vmem>>, %arg12: memref<128x128xbf16, #tpu.memory_space<vmem>>, %arg13: memref<1x128xf32, #tpu.memory_space<vmem>>, %arg14: memref<1x4x128xf32, #tpu.memory_space<vmem>>, %arg15: memref<24x128xf32, #tpu.memory_space<vmem>>, %arg16: memref<24x128xf32, #tpu.memory_space<vmem>>) attributes {dimension_semantics = [#tpu.dimension_semantics<parallel>], iteration_bounds = array<i64: 2>, scalar_prefetch = 0 : i64, scratch_operands = 2 : i64, tpu.core_type = #tpu.core_type<tc>, window_params = [{transform_indices = @transform_0, window_bounds = array<i64: 1, 16, 128>}, {pipeline_mode = #tpu.pipeline_mode<synchronous>, transform_indices = @transform_1, window_bounds = array<i64: 256, 128>}, {pipeline_mode = #tpu.pipeline_mode<synchronous>, transform_indices = @transform_2, window_bounds = array<i64: 1, 128>}, {pipeline_mode = #tpu.pipeline_mode<synchronous>, transform_indices = @transform_3, window_bounds = array<i64: 256, 128>}, {pipeline_mode = #tpu.pipeline_mode<synchronous>, transform_indices = @transform_4, window_bounds = array<i64: 1, 128>}, {pipeline_mode = #tpu.pipeline_mode<synchronous>, transform_indices = @transform_5, window_bounds = array<i64: 128, 128>}, {pipeline_mode = #tpu.pipeline_mode<synchronous>, transform_indices = @transform_6, window_bounds = array<i64: 1, 128>}, {pipeline_mode = #tpu.pipeline_mode<synchronous>, transform_indices = @transform_7, window_bounds = array<i64: 256, 128>}, {pipeline_mode = #tpu.pipeline_mode<synchronous>, transform_indices = @transform_8, window_bounds = array<i64: 1, 128>}, {pipeline_mode = #tpu.pipeline_mode<synchronous>, transform_indices = @transform_9, window_bounds = array<i64: 256, 128>}, {pipeline_mode = #tpu.pipeline_mode<synchronous>, transform_indices = @transform_10, window_bounds = array<i64: 1, 128>}, {pipeline_mode = #tpu.pipeline_mode<synchronous>, transform_indices = @transform_11, window_bounds = array<i64: 128, 128>}, {pipeline_mode = #tpu.pipeline_mode<synchronous>, transform_indices = @transform_12, window_bounds = array<i64: 1, 128>}, {transform_indices = @transform_13, window_bounds = array<i64: 1, 4, 128>}]} {
    %cst = arith.constant 0.000000e+00 : f32
    %0 = vector.broadcast %cst : f32 to vector<8x128xf32>
    %c0 = arith.constant 0 : index
    %c0_0 = arith.constant 0 : index
    %1 = vector.load %arg15[%c0, %c0_0] : memref<24x128xf32, #tpu.memory_space<vmem>>, vector<8x128xf32>
    tpu.vector_store %arg15[%c0, %c0_0], %0 {strides = array<i32>} : memref<24x128xf32, #tpu.memory_space<vmem>>, vector<8x128xf32>,
    %c0_1 = arith.constant 0 : index
    %c0_2 = arith.constant 0 : index
    %2 = vector.load %arg16[%c0_1, %c0_2] : memref<24x128xf32, #tpu.memory_space<vmem>>, vector<8x128xf32>
    tpu.vector_store %arg16[%c0_1, %c0_2], %0 {strides = array<i32>} : memref<24x128xf32, #tpu.memory_space<vmem>>, vector<8x128xf32>,
    %c0_3 = arith.constant 0 : index
    %c0_4 = arith.constant 0 : index
    %c0_5 = arith.constant 0 : index
    %3 = vector.load %arg1[%c0_3, %c0_4, %c0_5] : memref<1x16x128xf32, #tpu.memory_space<vmem>>, vector<1x16x128xf32>
    %4 = vector.shape_cast %3 : vector<1x16x128xf32> to vector<16x128xf32>
    %c8 = arith.constant 8 : index
    %c0_6 = arith.constant 0 : index
    %5 = vector.load %arg15[%c8, %c0_6] : memref<24x128xf32, #tpu.memory_space<vmem>>, vector<16x128xf32>
    tpu.vector_store %arg15[%c8, %c0_6], %4 {strides = array<i32>} : memref<24x128xf32, #tpu.memory_space<vmem>>, vector<16x128xf32>,
    %c7 = arith.constant 7 : index
    %c0_7 = arith.constant 0 : index
    %6 = vector.load %arg15[%c7, %c0_7] : memref<24x128xf32, #tpu.memory_space<vmem>>, vector<16x128xf32>
    %c8_8 = arith.constant 8 : index
    %c0_9 = arith.constant 0 : index
    %7 = vector.load %arg15[%c8_8, %c0_9] : memref<24x128xf32, #tpu.memory_space<vmem>>, vector<16x128xf32>
    %8 = tpu.concatenate %6, %7 in 1 : vector<16x128xf32>, vector<16x128xf32> -> vector<16x256xf32>
    %9 = arith.truncf %8 : vector<16x256xf32> to vector<16x256xbf16>
    %c0_10 = arith.constant 0 : index
    %c0_11 = arith.constant 0 : index
    %10 = vector.load %arg2[%c0_10, %c0_11] : memref<256x128xbf16, #tpu.memory_space<vmem>>, vector<256x128xbf16>
    %cst_12 = arith.constant dense<0.000000e+00> : vector<16x128xf32>
    %11 = tpu.matmul %9, %10, %cst_12 {dimension_numbers = #tpu.dot_dimension_numbers<[1], [0], [0], [1], [0, 0, 1, 1], [], []>} : vector<16x256xbf16>, vector<256x128xbf16>, vector<16x128xf32> -> vector<16x128xf32>
    %c0_13 = arith.constant 0 : index
    %c0_14 = arith.constant 0 : index
    %12 = vector.load %arg3[%c0_13, %c0_14] : memref<1x128xf32, #tpu.memory_space<vmem>>, vector<1x128xf32>
    %13 = vector.broadcast %12 : vector<1x128xf32> to vector<16x128xf32>
    %14 = arith.addf %11, %13 : vector<16x128xf32>
    %cst_15 = arith.constant 0.000000e+00 : f32
    %15 = vector.broadcast %cst_15 : f32 to vector<16x128xf32>
    %16 = arith.maximumf %14, %15 : vector<16x128xf32>
    %c8_16 = arith.constant 8 : index
    %c0_17 = arith.constant 0 : index
    %17 = vector.load %arg16[%c8_16, %c0_17] : memref<24x128xf32, #tpu.memory_space<vmem>>, vector<16x128xf32>
    tpu.vector_store %arg16[%c8_16, %c0_17], %16 {strides = array<i32>} : memref<24x128xf32, #tpu.memory_space<vmem>>, vector<16x128xf32>,
    %c7_18 = arith.constant 7 : index
    %c0_19 = arith.constant 0 : index
    %18 = vector.load %arg16[%c7_18, %c0_19] : memref<24x128xf32, #tpu.memory_space<vmem>>, vector<16x128xf32>
    %c8_20 = arith.constant 8 : index
    %c0_21 = arith.constant 0 : index
    %19 = vector.load %arg16[%c8_20, %c0_21] : memref<24x128xf32, #tpu.memory_space<vmem>>, vector<16x128xf32>
    %20 = tpu.concatenate %18, %19 in 1 : vector<16x128xf32>, vector<16x128xf32> -> vector<16x256xf32>
    %21 = arith.truncf %20 : vector<16x256xf32> to vector<16x256xbf16>
    %c0_22 = arith.constant 0 : index
    %c0_23 = arith.constant 0 : index
    %22 = vector.load %arg4[%c0_22, %c0_23] : memref<256x128xbf16, #tpu.memory_space<vmem>>, vector<256x128xbf16>
    %cst_24 = arith.constant dense<0.000000e+00> : vector<16x128xf32>
    %23 = tpu.matmul %21, %22, %cst_24 {dimension_numbers = #tpu.dot_dimension_numbers<[1], [0], [0], [1], [0, 0, 1, 1], [], []>} : vector<16x256xbf16>, vector<256x128xbf16>, vector<16x128xf32> -> vector<16x128xf32>
    %c0_25 = arith.constant 0 : index
    %c0_26 = arith.constant 0 : index
    %24 = vector.load %arg5[%c0_25, %c0_26] : memref<1x128xf32, #tpu.memory_space<vmem>>, vector<1x128xf32>
    %25 = vector.broadcast %24 : vector<1x128xf32> to vector<16x128xf32>
    %26 = arith.addf %23, %25 : vector<16x128xf32>
    %cst_27 = arith.constant 0.000000e+00 : f32
    %27 = vector.broadcast %cst_27 : f32 to vector<16x128xf32>
    %28 = arith.maximumf %26, %27 : vector<16x128xf32>
    %c8_28 = arith.constant 8 : index
    %c0_29 = arith.constant 0 : index
    %29 = vector.load %arg15[%c8_28, %c0_29] : memref<24x128xf32, #tpu.memory_space<vmem>>, vector<16x128xf32>
    %30 = arith.truncf %29 : vector<16x128xf32> to vector<16x128xbf16>
    %c0_30 = arith.constant 0 : index
    %c0_31 = arith.constant 0 : index
    %31 = vector.load %arg6[%c0_30, %c0_31] : memref<128x128xbf16, #tpu.memory_space<vmem>>, vector<128x128xbf16>
    %cst_32 = arith.constant dense<0.000000e+00> : vector<16x128xf32>
    %32 = tpu.matmul %30, %31, %cst_32 {dimension_numbers = #tpu.dot_dimension_numbers<[1], [0], [0], [1], [0, 0, 1, 1], [], []>} : vector<16x128xbf16>, vector<128x128xbf16>, vector<16x128xf32> -> vector<16x128xf32>
    %c0_33 = arith.constant 0 : index
    %c0_34 = arith.constant 0 : index
    %33 = vector.load %arg7[%c0_33, %c0_34] : memref<1x128xf32, #tpu.memory_space<vmem>>, vector<1x128xf32>
    %34 = vector.broadcast %33 : vector<1x128xf32> to vector<16x128xf32>
    %35 = arith.addf %32, %34 : vector<16x128xf32>
    %36 = arith.addf %28, %35 : vector<16x128xf32>
    %cst_35 = arith.constant 0.000000e+00 : f32
    %37 = vector.broadcast %cst_35 : f32 to vector<16x128xf32>
    %38 = arith.maximumf %36, %37 : vector<16x128xf32>
    %c8_36 = arith.constant 8 : index
    %c0_37 = arith.constant 0 : index
    %39 = vector.load %arg15[%c8_36, %c0_37] : memref<24x128xf32, #tpu.memory_space<vmem>>, vector<16x128xf32>
    tpu.vector_store %arg15[%c8_36, %c0_37], %38 {strides = array<i32>} : memref<24x128xf32, #tpu.memory_space<vmem>>, vector<16x128xf32>,
    %c6 = arith.constant 6 : index
    %c0_38 = arith.constant 0 : index
    %40 = vector.load %arg15[%c6, %c0_38] : memref<24x128xf32, #tpu.memory_space<vmem>>, vector<16x128xf32>
    %c8_39 = arith.constant 8 : index
    %c0_40 = arith.constant 0 : index
    %41 = vector.load %arg15[%c8_39, %c0_40] : memref<24x128xf32, #tpu.memory_space<vmem>>, vector<16x128xf32>
    %42 = tpu.concatenate %40, %41 in 1 : vector<16x128xf32>, vector<16x128xf32> -> vector<16x256xf32>
    %43 = arith.truncf %42 : vector<16x256xf32> to vector<16x256xbf16>
    %c0_41 = arith.constant 0 : index
    %c0_42 = arith.constant 0 : index
    %44 = vector.load %arg8[%c0_41, %c0_42] : memref<256x128xbf16, #tpu.memory_space<vmem>>, vector<256x128xbf16>
    %cst_43 = arith.constant dense<0.000000e+00> : vector<16x128xf32>
    %45 = tpu.matmul %43, %44, %cst_43 {dimension_numbers = #tpu.dot_dimension_numbers<[1], [0], [0], [1], [0, 0, 1, 1], [], []>} : vector<16x256xbf16>, vector<256x128xbf16>, vector<16x128xf32> -> vector<16x128xf32>
    %c0_44 = arith.constant 0 : index
    %c0_45 = arith.constant 0 : index
    %46 = vector.load %arg9[%c0_44, %c0_45] : memref<1x128xf32, #tpu.memory_space<vmem>>, vector<1x128xf32>
    %47 = vector.broadcast %46 : vector<1x128xf32> to vector<16x128xf32>
    %48 = arith.addf %45, %47 : vector<16x128xf32>
    %cst_46 = arith.constant 0.000000e+00 : f32
    %49 = vector.broadcast %cst_46 : f32 to vector<16x128xf32>
    %50 = arith.maximumf %48, %49 : vector<16x128xf32>
    %c8_47 = arith.constant 8 : index
    %c0_48 = arith.constant 0 : index
    %51 = vector.load %arg16[%c8_47, %c0_48] : memref<24x128xf32, #tpu.memory_space<vmem>>, vector<16x128xf32>
    tpu.vector_store %arg16[%c8_47, %c0_48], %50 {strides = array<i32>} : memref<24x128xf32, #tpu.memory_space<vmem>>, vector<16x128xf32>,
    %c6_49 = arith.constant 6 : index
    %c0_50 = arith.constant 0 : index
    %52 = vector.load %arg16[%c6_49, %c0_50] : memref<24x128xf32, #tpu.memory_space<vmem>>, vector<16x128xf32>
    %c8_51 = arith.constant 8 : index
    %c0_52 = arith.constant 0 : index
    %53 = vector.load %arg16[%c8_51, %c0_52] : memref<24x128xf32, #tpu.memory_space<vmem>>, vector<16x128xf32>
    %54 = tpu.concatenate %52, %53 in 1 : vector<16x128xf32>, vector<16x128xf32> -> vector<16x256xf32>
    %55 = arith.truncf %54 : vector<16x256xf32> to vector<16x256xbf16>
    %c0_53 = arith.constant 0 : index
    %c0_54 = arith.constant 0 : index
    %56 = vector.load %arg10[%c0_53, %c0_54] : memref<256x128xbf16, #tpu.memory_space<vmem>>, vector<256x128xbf16>
    %cst_55 = arith.constant dense<0.000000e+00> : vector<16x128xf32>
    %57 = tpu.matmul %55, %56, %cst_55 {dimension_numbers = #tpu.dot_dimension_numbers<[1], [0], [0], [1], [0, 0, 1, 1], [], []>} : vector<16x256xbf16>, vector<256x128xbf16>, vector<16x128xf32> -> vector<16x128xf32>
    %c0_56 = arith.constant 0 : index
    %c0_57 = arith.constant 0 : index
    %58 = vector.load %arg11[%c0_56, %c0_57] : memref<1x128xf32, #tpu.memory_space<vmem>>, vector<1x128xf32>
    %59 = vector.broadcast %58 : vector<1x128xf32> to vector<16x128xf32>
    %60 = arith.addf %57, %59 : vector<16x128xf32>
    %cst_58 = arith.constant 0.000000e+00 : f32
    %61 = vector.broadcast %cst_58 : f32 to vector<16x128xf32>
    %62 = arith.maximumf %60, %61 : vector<16x128xf32>
    %c8_59 = arith.constant 8 : index
    %c0_60 = arith.constant 0 : index
    %63 = vector.load %arg15[%c8_59, %c0_60] : memref<24x128xf32, #tpu.memory_space<vmem>>, vector<16x128xf32>
    %64 = arith.addf %62, %63 : vector<16x128xf32>
    %cst_61 = arith.constant 0.000000e+00 : f32
    %65 = vector.broadcast %cst_61 : f32 to vector<16x128xf32>
    %66 = arith.maximumf %64, %65 : vector<16x128xf32>
    %c8_62 = arith.constant 8 : index
    %c0_63 = arith.constant 0 : index
    %67 = vector.load %arg15[%c8_62, %c0_63] : memref<24x128xf32, #tpu.memory_space<vmem>>, vector<16x128xf32>
    tpu.vector_store %arg15[%c8_62, %c0_63], %66 {strides = array<i32>} : memref<24x128xf32, #tpu.memory_space<vmem>>, vector<16x128xf32>,
    %c20 = arith.constant 20 : index
    %c0_64 = arith.constant 0 : index
    %68 = vector.load %arg15[%c20, %c0_64] : memref<24x128xf32, #tpu.memory_space<vmem>>, vector<4x128xf32>
    %69 = arith.truncf %68 : vector<4x128xf32> to vector<4x128xbf16>
    %c0_65 = arith.constant 0 : index
    %c0_66 = arith.constant 0 : index
    %70 = vector.load %arg12[%c0_65, %c0_66] : memref<128x128xbf16, #tpu.memory_space<vmem>>, vector<128x128xbf16>
    %cst_67 = arith.constant dense<0.000000e+00> : vector<4x128xf32>
    %71 = tpu.matmul %69, %70, %cst_67 {dimension_numbers = #tpu.dot_dimension_numbers<[1], [0], [0], [1], [0, 0, 1, 1], [], []>} : vector<4x128xbf16>, vector<128x128xbf16>, vector<4x128xf32> -> vector<4x128xf32>
    %c0_68 = arith.constant 0 : index
    %c0_69 = arith.constant 0 : index
    %72 = vector.load %arg13[%c0_68, %c0_69] : memref<1x128xf32, #tpu.memory_space<vmem>>, vector<1x128xf32>
    %73 = vector.broadcast %72 : vector<1x128xf32> to vector<4x128xf32>
    %74 = arith.addf %71, %73 : vector<4x128xf32>
    %c0_70 = arith.constant 0 : index
    %c0_71 = arith.constant 0 : index
    %c0_72 = arith.constant 0 : index
    %75 = vector.load %arg14[%c0_70, %c0_71, %c0_72] : memref<1x4x128xf32, #tpu.memory_space<vmem>>, vector<1x4x128xf32>
    %76 = vector.shape_cast %75 : vector<1x4x128xf32> to vector<4x128xf32>
    %77 = vector.shape_cast %74 : vector<4x128xf32> to vector<1x4x128xf32>
    tpu.vector_store %arg14[%c0_70, %c0_71, %c0_72], %77 {strides = array<i32>} : memref<1x4x128xf32, #tpu.memory_space<vmem>>, vector<1x4x128xf32>,
    return
  }
  func.func @transform_0(%arg0: i32) -> (i32, i32, i32) {
    %c0_i32 = arith.constant 0 : i32
    %c0_i32_0 = arith.constant 0 : i32
    %c0_i32_1 = arith.constant 0 : i32
    return %arg0, %c0_i32, %c0_i32_0 : i32, i32, i32
  }
  func.func @transform_1(%arg0: i32) -> (i32, i32) {
    %c0_i32 = arith.constant 0 : i32
    %c0_i32_0 = arith.constant 0 : i32
    %c0_i32_1 = arith.constant 0 : i32
    return %c0_i32, %c0_i32_0 : i32, i32
  }
  func.func @transform_2(%arg0: i32) -> (i32, i32) {
    %c0_i32 = arith.constant 0 : i32
    %c0_i32_0 = arith.constant 0 : i32
    %c0_i32_1 = arith.constant 0 : i32
    return %c0_i32, %c0_i32_0 : i32, i32
  }
  func.func @transform_3(%arg0: i32) -> (i32, i32) {
    %c0_i32 = arith.constant 0 : i32
    %c0_i32_0 = arith.constant 0 : i32
    %c0_i32_1 = arith.constant 0 : i32
    return %c0_i32, %c0_i32_0 : i32, i32
  }
  func.func @transform_4(%arg0: i32) -> (i32, i32) {
    %c0_i32 = arith.constant 0 : i32
    %c0_i32_0 = arith.constant 0 : i32
    %c0_i32_1 = arith.constant 0 : i32
    return %c0_i32, %c0_i32_0 : i32, i32
  }
  func.func @transform_5(%arg0: i32) -> (i32, i32) {
    %c0_i32 = arith.constant 0 : i32
    %c0_i32_0 = arith.constant 0 : i32
    %c0_i32_1 = arith.constant 0 : i32
    return %c0_i32, %c0_i32_0 : i32, i32
  }
  func.func @transform_6(%arg0: i32) -> (i32, i32) {
    %c0_i32 = arith.constant 0 : i32
    %c0_i32_0 = arith.constant 0 : i32
    %c0_i32_1 = arith.constant 0 : i32
    return %c0_i32, %c0_i32_0 : i32, i32
  }
  func.func @transform_7(%arg0: i32) -> (i32, i32) {
    %c0_i32 = arith.constant 0 : i32
    %c0_i32_0 = arith.constant 0 : i32
    %c0_i32_1 = arith.constant 0 : i32
    return %c0_i32, %c0_i32_0 : i32, i32
  }
  func.func @transform_8(%arg0: i32) -> (i32, i32) {
    %c0_i32 = arith.constant 0 : i32
    %c0_i32_0 = arith.constant 0 : i32
    %c0_i32_1 = arith.constant 0 : i32
    return %c0_i32, %c0_i32_0 : i32, i32
  }
  func.func @transform_9(%arg0: i32) -> (i32, i32) {
    %c0_i32 = arith.constant 0 : i32
    %c0_i32_0 = arith.constant 0 : i32
    %c0_i32_1 = arith.constant 0 : i32
    return %c0_i32, %c0_i32_0 : i32, i32
  }
  func.func @transform_10(%arg0: i32) -> (i32, i32) {
    %c0_i32 = arith.constant 0 : i32
    %c0_i32_0 = arith.constant 0 : i32
    %c0_i32_1 = arith.constant 0 : i32
    return %c0_i32, %c0_i32_0 : i32, i32
  }
  func.func @transform_11(%arg0: i32) -> (i32, i32) {
    %c0_i32 = arith.constant 0 : i32
    %c0_i32_0 = arith.constant 0 : i32
    %c0_i32_1 = arith.constant 0 : i32
    return %c0_i32, %c0_i32_0 : i32, i32
  }
  func.func @transform_12(%arg0: i32) -> (i32, i32) {
    %c0_i32 = arith.constant 0 : i32
    %c0_i32_0 = arith.constant 0 : i32
    %c0_i32_1 = arith.constant 0 : i32
    return %c0_i32, %c0_i32_0 : i32, i32
  }
  func.func @transform_13(%arg0: i32) -> (i32, i32, i32) {
    %c0_i32 = arith.constant 0 : i32
    %c0_i32_0 = arith.constant 0 : i32
    %c0_i32_1 = arith.constant 0 : i32
    return %arg0, %c0_i32, %c0_i32_0 : i32, i32, i32
  }
}

</mosaic_0001>

<llo_original>
// kernel: tpu_custom_call.1
$region0: #{tpu_custom_call.1}
  #allocation0 [shape = 'u32[]', space=smem, size = 0x4, offset = 0x4, fixed_abs, tag = 'smem constant byte address 0x4 - core index']
  #allocation1 [shape = 'u32[144,128]{1,0:T(1,128)}', space=vmem, size = 0x12000, scoped, tag = 'internal scratch']
  #allocation2 [shape = 'f32[24,128]{1,0:T(8,128)}', space=vmem, size = 0x3000, scoped, tag = 'scratch operand']
  #allocation3 [shape = 'f32[24,128]{1,0:T(8,128)}', space=vmem, size = 0x3000, scoped, tag = 'scratch operand']
  %s0 = inlined_call_operand.hbm [shape: f32[2,16,128], index: 0, kind: input, shape index: {}]
  %s1 = inlined_call_operand.hbm [shape: bf16[256,128], index: 1, kind: input, shape index: {}]
  %s2 = inlined_call_operand.vmem [shape: f32[1,128], index: 2, kind: input, shape index: {}]
  %s3 = inlined_call_operand.hbm [shape: bf16[256,128], index: 3, kind: input, shape index: {}]
  %s4 = inlined_call_operand.vmem [shape: f32[1,128], index: 4, kind: input, shape index: {}]
  %s5 = inlined_call_operand.hbm [shape: bf16[128,128], index: 5, kind: input, shape index: {}]
  %s6 = inlined_call_operand.vmem [shape: f32[1,128], index: 6, kind: input, shape index: {}]
  %s7 = inlined_call_operand.hbm [shape: bf16[256,128], index: 7, kind: input, shape index: {}]
  %s8 = inlined_call_operand.vmem [shape: f32[1,128], index: 8, kind: input, shape index: {}]
  %s9 = inlined_call_operand.hbm [shape: bf16[256,128], index: 9, kind: input, shape index: {}]
  %s10 = inlined_call_operand.vmem [shape: f32[1,128], index: 10, kind: input, shape index: {}]
  %s11 = inlined_call_operand.hbm [shape: bf16[128,128], index: 11, kind: input, shape index: {}]
  %s12 = inlined_call_operand.vmem [shape: f32[1,128], index: 12, kind: input, shape index: {}]
  %s13 = inlined_call_operand.hbm [shape: f32[2,4,128], index: 13, kind: output, shape index: {}]
  %s14 = sld [smem:[#allocation0]]
  $region113: #{tpu_custom_call.1} parent=0
    _
  %s16 = ssub.s32 1, %s14
  %s17 = scalar_select 0, %s16, %s14
  $region1: #{tpu_custom_call.1} parent=0
    #allocation4 [shape = 'u8[16384]{0}', space=vmem, size = 0x4000, scoped, tag = 'input window, operand 0']
    #allocation5 [shape = 's32[2]{0}', space=sflag, size = 0x8, scoped, tag = 'scoped memory for tpu_custom_call.1']
    #allocation6 [shape = 's32[2]{0}', space=sflag, size = 0x8, scoped, tag = 'scoped memory for tpu_custom_call.1']
    #allocation7 [shape = 'u8[65536]{0}', space=vmem, size = 0x10000, scoped, tag = 'input window, operand 1, single buffered']
    #allocation8 [shape = 's32[1]{0}', space=sflag, size = 0x4, scoped, tag = 'scoped memory for tpu_custom_call.1']
    #allocation9 [shape = 'u8[65536]{0}', space=vmem, size = 0x10000, scoped, tag = 'input window, operand 3, single buffered']
    #allocation10 [shape = 'u8[32768]{0}', space=vmem, size = 0x8000, scoped, tag = 'input window, operand 5, single buffered']
    #allocation11 [shape = 's32[1]{0}', space=sflag, size = 0x4, scoped, tag = 'scoped memory for tpu_custom_call.1']
    #allocation12 [shape = 'u8[65536]{0}', space=vmem, size = 0x10000, scoped, tag = 'input window, operand 7, single buffered']
    #allocation13 [shape = 'u8[65536]{0}', space=vmem, size = 0x10000, scoped, tag = 'input window, operand 9, single buffered']
    #allocation14 [shape = 's32[1]{0}', space=sflag, size = 0x4, scoped, tag = 'scoped memory for tpu_custom_call.1']
    #allocation15 [shape = 'u8[32768]{0}', space=vmem, size = 0x8000, scoped, tag = 'input window, operand 11, single buffered']
    #allocation16 [shape = 'u8[4096]{0}', space=vmem, size = 0x1000, scoped, tag = 'output window, operand 0']
    %18 = vsyncpa [#allocation5], 0
    %s19 = scalar_lea.sflag [#allocation5], 1
    %20 = vsyncpa %s19, 0
    %21 = vsyncpa [#allocation8], 0
    %22 = vsyncpa [#allocation11], 0
    %23 = vsyncpa [#allocation14], 0
    %24 = vsyncpa [#allocation6], 0
    %s25 = scalar_lea.sflag [#allocation6], 1
    %26 = vsyncpa %s25, 0
    loop: start=0, step=1, limit=4
    $region2: #{tpu_custom_call.1} parent=1 // loop_pre_header
      _
    $region3: #{tpu_custom_call.1} parent=1 // loop_header
      %s28 = sphi 0, %s32
      %p29 = scmp.ge.s32.totalorder %s28, 4
      %s38 = sphi 0, %s40
      %s41 = sphi 0, %s38
      %s42 = sphi 0, %s41
      %s58 = sphi 0, %s42
      %s62 = sphi 0, %s62
      %s64 = sphi 0, %s62
      %s65 = sphi 0, %s64
      %s79 = sphi 0, %s65
      %s83 = sphi 0, %s83
      %s85 = sphi 0, %s83
      %s86 = sphi 0, %s85
      %s100 = sphi 0, %s86
      %s104 = sphi 0, %s104
      %s106 = sphi 0, %s104
      %s107 = sphi 0, %s106
      %s121 = sphi 0, %s107
      %s125 = sphi 0, %s125
      %s127 = sphi 0, %s125
      %s128 = sphi 0, %s127
      %s142 = sphi 0, %s128
      %s146 = sphi 0, %s146
      %s148 = sphi 0, %s146
      %s149 = sphi 0, %s148
      %s163 = sphi 0, %s149
      %s167 = sphi 0, %s167
      %s169 = sphi 0, %s167
      %s170 = sphi 0, %s169
      %s184 = sphi 0, %s170
      %s188 = sphi 0, %s188
      %s190 = sphi 0, %s188
      %s191 = sphi 0, %s190
      %s205 = sphi 0, %s191
      %s209 = sphi 0, %s209
      %s211 = sphi 0, %s209
      %s212 = sphi 0, %s211
      %s226 = sphi 0, %s212
      %s230 = sphi 0, %s230
      %s232 = sphi 0, %s230
      %s233 = sphi 0, %s232
      %s247 = sphi 0, %s233
      %s251 = sphi 0, %s251
      %s253 = sphi 0, %s251
      %s254 = sphi 0, %s253
      %s268 = sphi 0, %s254
      %s272 = sphi 0, %s272
      %s274 = sphi 0, %s272
      %s275 = sphi 0, %s274
      %s289 = sphi 0, %s275
      %s293 = sphi 0, %s293
      %s295 = sphi 0, %s293
      %s296 = sphi 0, %s295
      %s310 = sphi 0, %s296
      %s316 = sphi 0, %s318
      %s319 = sphi 0, %s316
      %s320 = sphi 0, %s319
      %s336 = sphi 0, %s320
    $region4: #{tpu_custom_call.1} parent=1 // loop_header_branch
      %31 = sbr.rel (%p29) target = $region8
    $region5: #{tpu_custom_call.1} parent=1 // loop_body
      %s33 = ssub.s32 %s28, 1
      %s34 = ssub.s32 %s28, 2
      %s35 = sadd.s32 %s28, 1
      %s36 = ssub.s32 %s28, %s35
      %p37 = scmp.eq.s32.totalorder %s36, 0
      %s39 = sadd.s32 %s38, 1
      %s40 = scalar_select %p37, %s38, %s39
      %p43 = pneg %p37
      %p44 = scmp.eq.s32.totalorder %s28, 1
      %p45 = por %p43, %p44
      %p46 = scmp.ne.s32.totalorder %s38, %s41
      %p47 = scmp.eq.s32.totalorder %s28, 0
      %p48 = por %p46, %p47
      %p49 = scmp.ne.s32.totalorder %s38, %s41
      %p50 = scmp.eq.s32.totalorder %s33, 1
      %p51 = por %p49, %p50
      %p52 = scmp.ne.s32.totalorder %s41, %s42
      %p53 = scmp.eq.s32.totalorder %s33, 0
      %p54 = por %p52, %p53
      %p55 = scmp.ne.s32.totalorder %s41, %s42
      %p56 = scmp.eq.s32.totalorder %s34, 1
      %p57 = por %p55, %p56
      %p59 = scmp.ne.s32.totalorder %s42, %s58
      %p60 = scmp.eq.s32.totalorder %s34, 0
      %p61 = por %p59, %p60
      %s63 = sadd.s32 %s62, 1
      %p66 = scmp.eq.s32.totalorder %s28, 1
      %p67 = scmp.ne.s32.totalorder %s62, %s64
      %p68 = scmp.eq.s32.totalorder %s28, 0
      %p69 = por %p67, %p68
      %p70 = scmp.ne.s32.totalorder %s62, %s64
      %p71 = scmp.eq.s32.totalorder %s33, 1
      %p72 = por %p70, %p71
      %p73 = scmp.ne.s32.totalorder %s64, %s65
      %p74 = scmp.eq.s32.totalorder %s33, 0
      %p75 = por %p73, %p74
      %p76 = scmp.ne.s32.totalorder %s64, %s65
      %p77 = scmp.eq.s32.totalorder %s34, 1
      %p78 = por %p76, %p77
      %p80 = scmp.ne.s32.totalorder %s65, %s79
      %p81 = scmp.eq.s32.totalorder %s34, 0
      %p82 = por %p80, %p81
      %s84 = sadd.s32 %s83, 1
      %p87 = scmp.eq.s32.totalorder %s28, 1
      %p88 = scmp.ne.s32.totalorder %s83, %s85
      %p89 = scmp.eq.s32.totalorder %s28, 0
      %p90 = por %p88, %p89
      %p91 = scmp.ne.s32.totalorder %s83, %s85
      %p92 = scmp.eq.s32.totalorder %s33, 1
      %p93 = por %p91, %p92
      %p94 = scmp.ne.s32.totalorder %s85, %s86
      %p95 = scmp.eq.s32.totalorder %s33, 0
      %p96 = por %p94, %p95
      %p97 = scmp.ne.s32.totalorder %s85, %s86
      %p98 = scmp.eq.s32.totalorder %s34, 1
      %p99 = por %p97, %p98
      %p101 = scmp.ne.s32.totalorder %s86, %s100
      %p102 = scmp.eq.s32.totalorder %s34, 0
      %p103 = por %p101, %p102
      %s105 = sadd.s32 %s104, 1
      %p108 = scmp.eq.s32.totalorder %s28, 1
      %p109 = scmp.ne.s32.totalorder %s104, %s106
      %p110 = scmp.eq.s32.totalorder %s28, 0
      %p111 = por %p109, %p110
      %p112 = scmp.ne.s32.totalorder %s104, %s106
      %p113 = scmp.eq.s32.totalorder %s33, 1
      %p114 = por %p112, %p113
      %p115 = scmp.ne.s32.totalorder %s106, %s107
      %p116 = scmp.eq.s32.totalorder %s33, 0
      %p117 = por %p115, %p116
      %p118 = scmp.ne.s32.totalorder %s106, %s107
      %p119 = scmp.eq.s32.totalorder %s34, 1
      %p120 = por %p118, %p119
      %p122 = scmp.ne.s32.totalorder %s107, %s121
      %p123 = scmp.eq.s32.totalorder %s34, 0
      %p124 = por %p122, %p123
      %s126 = sadd.s32 %s125, 1
      %p129 = scmp.eq.s32.totalorder %s28, 1
      %p130 = scmp.ne.s32.totalorder %s125, %s127
      %p131 = scmp.eq.s32.totalorder %s28, 0
      %p132 = por %p130, %p131
      %p133 = scmp.ne.s32.totalorder %s125, %s127
      %p134 = scmp.eq.s32.totalorder %s33, 1
      %p135 = por %p133, %p134
      %p136 = scmp.ne.s32.totalorder %s127, %s128
      %p137 = scmp.eq.s32.totalorder %s33, 0
      %p138 = por %p136, %p137
      %p139 = scmp.ne.s32.totalorder %s127, %s128
      %p140 = scmp.eq.s32.totalorder %s34, 1
      %p141 = por %p139, %p140
      %p143 = scmp.ne.s32.totalorder %s128, %s142
      %p144 = scmp.eq.s32.totalorder %s34, 0
      %p145 = por %p143, %p144
      %s147 = sadd.s32 %s146, 1
      %p150 = scmp.eq.s32.totalorder %s28, 1
      %p151 = scmp.ne.s32.totalorder %s146, %s148
      %p152 = scmp.eq.s32.totalorder %s28, 0
      %p153 = por %p151, %p152
      %p154 = scmp.ne.s32.totalorder %s146, %s148
      %p155 = scmp.eq.s32.totalorder %s33, 1
      %p156 = por %p154, %p155
      %p157 = scmp.ne.s32.totalorder %s148, %s149
      %p158 = scmp.eq.s32.totalorder %s33, 0
      %p159 = por %p157, %p158
      %p160 = scmp.ne.s32.totalorder %s148, %s149
      %p161 = scmp.eq.s32.totalorder %s34, 1
      %p162 = por %p160, %p161
      %p164 = scmp.ne.s32.totalorder %s149, %s163
      %p165 = scmp.eq.s32.totalorder %s34, 0
      %p166 = por %p164, %p165
      %s168 = sadd.s32 %s167, 1
      %p171 = scmp.eq.s32.totalorder %s28, 1
      %p172 = scmp.ne.s32.totalorder %s167, %s169
      %p173 = scmp.eq.s32.totalorder %s28, 0
      %p174 = por %p172, %p173
      %p175 = scmp.ne.s32.totalorder %s167, %s169
      %p176 = scmp.eq.s32.totalorder %s33, 1
      %p177 = por %p175, %p176
      %p178 = scmp.ne.s32.totalorder %s169, %s170
      %p179 = scmp.eq.s32.totalorder %s33, 0
      %p180 = por %p178, %p179
      %p181 = scmp.ne.s32.totalorder %s169, %s170
      %p182 = scmp.eq.s32.totalorder %s34, 1
      %p183 = por %p181, %p182
      %p185 = scmp.ne.s32.totalorder %s170, %s184
      %p186 = scmp.eq.s32.totalorder %s34, 0
      %p187 = por %p185, %p186
      %s189 = sadd.s32 %s188, 1
      %p192 = scmp.eq.s32.totalorder %s28, 1
      %p193 = scmp.ne.s32.totalorder %s188, %s190
      %p194 = scmp.eq.s32.totalorder %s28, 0
      %p195 = por %p193, %p194
      %p196 = scmp.ne.s32.totalorder %s188, %s190
      %p197 = scmp.eq.s32.totalorder %s33, 1
      %p198 = por %p196, %p197
      %p199 = scmp.ne.s32.totalorder %s190, %s191
      %p200 = scmp.eq.s32.totalorder %s33, 0
      %p201 = por %p199, %p200
      %p202 = scmp.ne.s32.totalorder %s190, %s191
      %p203 = scmp.eq.s32.totalorder %s34, 1
      %p204 = por %p202, %p203
      %p206 = scmp.ne.s32.totalorder %s191, %s205
      %p207 = scmp.eq.s32.totalorder %s34, 0
      %p208 = por %p206, %p207
      %s210 = sadd.s32 %s209, 1
      %p213 = scmp.eq.s32.totalorder %s28, 1
      %p214 = scmp.ne.s32.totalorder %s209, %s211
      %p215 = scmp.eq.s32.totalorder %s28, 0
      %p216 = por %p214, %p215
      %p217 = scmp.ne.s32.totalorder %s209, %s211
      %p218 = scmp.eq.s32.totalorder %s33, 1
      %p219 = por %p217, %p218
      %p220 = scmp.ne.s32.totalorder %s211, %s212
      %p221 = scmp.eq.s32.totalorder %s33, 0
      %p222 = por %p220, %p221
      %p223 = scmp.ne.s32.totalorder %s211, %s212
      %p224 = scmp.eq.s32.totalorder %s34, 1
      %p225 = por %p223, %p224
      %p227 = scmp.ne.s32.totalorder %s212, %s226
      %p228 = scmp.eq.s32.totalorder %s34, 0
      %p229 = por %p227, %p228
      %s231 = sadd.s32 %s230, 1
      %p234 = scmp.eq.s32.totalorder %s28, 1
      %p235 = scmp.ne.s32.totalorder %s230, %s232
      %p236 = scmp.eq.s32.totalorder %s28, 0
      %p237 = por %p235, %p236
      %p238 = scmp.ne.s32.totalorder %s230, %s232
      %p239 = scmp.eq.s32.totalorder %s33, 1
      %p240 = por %p238, %p239
      %p241 = scmp.ne.s32.totalorder %s232, %s233
      %p242 = scmp.eq.s32.totalorder %s33, 0
      %p243 = por %p241, %p242
      %p244 = scmp.ne.s32.totalorder %s232, %s233
      %p245 = scmp.eq.s32.totalorder %s34, 1
      %p246 = por %p244, %p245
      %p248 = scmp.ne.s32.totalorder %s233, %s247
      %p249 = scmp.eq.s32.totalorder %s34, 0
      %p250 = por %p248, %p249
      %s252 = sadd.s32 %s251, 1
      %p255 = scmp.eq.s32.totalorder %s28, 1
      %p256 = scmp.ne.s32.totalorder %s251, %s253
      %p257 = scmp.eq.s32.totalorder %s28, 0
      %p258 = por %p256, %p257
      %p259 = scmp.ne.s32.totalorder %s251, %s253
      %p260 = scmp.eq.s32.totalorder %s33, 1
      %p261 = por %p259, %p260
      %p262 = scmp.ne.s32.totalorder %s253, %s254
      %p263 = scmp.eq.s32.totalorder %s33, 0
      %p264 = por %p262, %p263
      %p265 = scmp.ne.s32.totalorder %s253, %s254
      %p266 = scmp.eq.s32.totalorder %s34, 1
      %p267 = por %p265, %p266
      %p269 = scmp.ne.s32.totalorder %s254, %s268
      %p270 = scmp.eq.s32.totalorder %s34, 0
      %p271 = por %p269, %p270
      %s273 = sadd.s32 %s272, 1
      %p276 = scmp.eq.s32.totalorder %s28, 1
      %p277 = scmp.ne.s32.totalorder %s272, %s274
      %p278 = scmp.eq.s32.totalorder %s28, 0
      %p279 = por %p277, %p278
      %p280 = scmp.ne.s32.totalorder %s272, %s274
      %p281 = scmp.eq.s32.totalorder %s33, 1
      %p282 = por %p280, %p281
      %p283 = scmp.ne.s32.totalorder %s274, %s275
      %p284 = scmp.eq.s32.totalorder %s33, 0
      %p285 = por %p283, %p284
      %p286 = scmp.ne.s32.totalorder %s274, %s275
      %p287 = scmp.eq.s32.totalorder %s34, 1
      %p288 = por %p286, %p287
      %p290 = scmp.ne.s32.totalorder %s275, %s289
      %p291 = scmp.eq.s32.totalorder %s34, 0
      %p292 = por %p290, %p291
      %s294 = sadd.s32 %s293, 1
      %p297 = scmp.eq.s32.totalorder %s28, 1
      %p298 = scmp.ne.s32.totalorder %s293, %s295
      %p299 = scmp.eq.s32.totalorder %s28, 0
      %p300 = por %p298, %p299
      %p301 = scmp.ne.s32.totalorder %s293, %s295
      %p302 = scmp.eq.s32.totalorder %s33, 1
      %p303 = por %p301, %p302
      %p304 = scmp.ne.s32.totalorder %s295, %s296
      %p305 = scmp.eq.s32.totalorder %s33, 0
      %p306 = por %p304, %p305
      %p307 = scmp.ne.s32.totalorder %s295, %s296
      %p308 = scmp.eq.s32.totalorder %s34, 1
      %p309 = por %p307, %p308
      %p311 = scmp.ne.s32.totalorder %s296, %s310
      %p312 = scmp.eq.s32.totalorder %s34, 0
      %p313 = por %p311, %p312
      %s314 = ssub.s32 %s28, %s35
      %p315 = scmp.eq.s32.totalorder %s314, 0
      %s317 = sadd.s32 %s316, 1
      %s318 = scalar_select %p315, %s316, %s317
      %p321 = pneg %p315
      %p322 = scmp.eq.s32.totalorder %s28, 1
      %p323 = por %p321, %p322
      %p324 = scmp.ne.s32.totalorder %s316, %s319
      %p325 = scmp.eq.s32.totalorder %s28, 0
      %p326 = por %p324, %p325
      %p327 = scmp.ne.s32.totalorder %s316, %s319
      %p328 = scmp.eq.s32.totalorder %s33, 1
      %p329 = por %p327, %p328
      %p330 = scmp.ne.s32.totalorder %s319, %s320
      %p331 = scmp.eq.s32.totalorder %s33, 0
      %p332 = por %p330, %p331
      %p333 = scmp.ne.s32.totalorder %s319, %s320
      %p334 = scmp.eq.s32.totalorder %s34, 1
      %p335 = por %p333, %p334
      %p337 = scmp.ne.s32.totalorder %s320, %s336
      %p338 = scmp.eq.s32.totalorder %s34, 0
      %p339 = por %p337, %p338
      %p340 = scmp.le.s32.totalorder 1, %s28
      %p341 = scmp.lt.s32.totalorder %s28, 3
      %p342 = pnand %p340, %p341
      %p343 = pneg %p342
      // Predicated region
      $region9: #{tpu_custom_call.1} parent=5 // pred_check
        _
      $region10: #{tpu_custom_call.1} parent=5 // pred_check_branch
        %345 = sbr.rel (%p342) target = $region12
      $region11: #{tpu_custom_call.1} parent=5 // pred_region
        %s346 = ssub.s32 %s28, 1
        // Predicated region
        $region13: #{tpu_custom_call.1} parent=11 // pred_check
          %p347 = pneg %p75
        $region14: #{tpu_custom_call.1} parent=11 // pred_check_branch
          %349 = sbr.rel (%p347) target = $region16
        $region15: #{tpu_custom_call.1} parent=11 // pred_region
          %s351 = ssub.s32 2048, 2048
          %352 = vsyncadd [#allocation8], %s351
          %s353 = sshll.u32 [#allocation7], 4
          %s354 = int_to_ptr.vmem [resolvable:$true] %s353
          %359 = dma.hbm_to_vmem [thread:$0]  %s1, 2048, %s354, [#allocation8], 64, 64, 4
        $region16: #{tpu_custom_call.1} parent=11 // pred_fallthru
          _
        // Predicated region
        $region17: #{tpu_custom_call.1} parent=11 // pred_check
          %p360 = pneg %p96
        $region18: #{tpu_custom_call.1} parent=11 // pred_check_branch
          %362 = sbr.rel (%p360) target = $region20
        $region19: #{tpu_custom_call.1} parent=11 // pred_region
          _
        $region20: #{tpu_custom_call.1} parent=11 // pred_fallthru
          _
        // Predicated region
        $region21: #{tpu_custom_call.1} parent=11 // pred_check
          %p363 = pneg %p117
        $region22: #{tpu_custom_call.1} parent=11 // pred_check_branch
          %365 = sbr.rel (%p363) target = $region24
        $region23: #{tpu_custom_call.1} parent=11 // pred_region
          %s367 = ssub.s32 2048, 2048
          %368 = vsyncadd [#allocation8], %s367
          %s369 = sshll.u32 [#allocation9], 4
          %s370 = int_to_ptr.vmem [resolvable:$true] %s369
          %375 = dma.hbm_to_vmem [thread:$0]  %s3, 2048, %s370, [#allocation8], 64, 64, 4
        $region24: #{tpu_custom_call.1} parent=11 // pred_fallthru
          _
        // Predicated region
        $region25: #{tpu_custom_call.1} parent=11 // pred_check
          %p376 = pneg %p138
        $region26: #{tpu_custom_call.1} parent=11 // pred_check_branch
          %378 = sbr.rel (%p376) target = $region28
        $region27: #{tpu_custom_call.1} parent=11 // pred_region
          _
        $region28: #{tpu_custom_call.1} parent=11 // pred_fallthru
          _
        // Predicated region
        $region29: #{tpu_custom_call.1} parent=11 // pred_check
          %p379 = pneg %p159
        $region30: #{tpu_custom_call.1} parent=11 // pred_check_branch
          %381 = sbr.rel (%p379) target = $region32
        $region31: #{tpu_custom_call.1} parent=11 // pred_region
          %s383 = ssub.s32 1024, 1024
          %384 = vsyncadd [#allocation11], %s383
          %s385 = sshll.u32 [#allocation10], 4
          %s386 = int_to_ptr.vmem [resolvable:$true] %s385
          %391 = dma.hbm_to_vmem [thread:$0]  %s5, 1024, %s386, [#allocation11], 64, 64, 4
        $region32: #{tpu_custom_call.1} parent=11 // pred_fallthru
          _
        // Predicated region
        $region33: #{tpu_custom_call.1} parent=11 // pred_check
          %p392 = pneg %p180
        $region34: #{tpu_custom_call.1} parent=11 // pred_check_branch
          %394 = sbr.rel (%p392) target = $region36
        $region35: #{tpu_custom_call.1} parent=11 // pred_region
          _
        $region36: #{tpu_custom_call.1} parent=11 // pred_fallthru
          _
        // Predicated region
        $region37: #{tpu_custom_call.1} parent=11 // pred_check
          %p395 = pneg %p201
        $region38: #{tpu_custom_call.1} parent=11 // pred_check_branch
          %397 = sbr.rel (%p395) target = $region40
        $region39: #{tpu_custom_call.1} parent=11 // pred_region
          %s399 = ssub.s32 2048, 2048
          %400 = vsyncadd [#allocation11], %s399
          %s401 = sshll.u32 [#allocation12], 4
          %s402 = int_to_ptr.vmem [resolvable:$true] %s401
          %407 = dma.hbm_to_vmem [thread:$0]  %s7, 2048, %s402, [#allocation11], 64, 64, 4
        $region40: #{tpu_custom_call.1} parent=11 // pred_fallthru
          _
        // Predicated region
        $region41: #{tpu_custom_call.1} parent=11 // pred_check
          %p408 = pneg %p222
        $region42: #{tpu_custom_call.1} parent=11 // pred_check_branch
          %410 = sbr.rel (%p408) target = $region44
        $region43: #{tpu_custom_call.1} parent=11 // pred_region
          _
        $region44: #{tpu_custom_call.1} parent=11 // pred_fallthru
          _
        // Predicated region
        $region45: #{tpu_custom_call.1} parent=11 // pred_check
          %p411 = pneg %p243
        $region46: #{tpu_custom_call.1} parent=11 // pred_check_branch
          %413 = sbr.rel (%p411) target = $region48
        $region47: #{tpu_custom_call.1} parent=11 // pred_region
          %s415 = ssub.s32 2048, 2048
          %416 = vsyncadd [#allocation14], %s415
          %s417 = sshll.u32 [#allocation13], 4
          %s418 = int_to_ptr.vmem [resolvable:$true] %s417
          %423 = dma.hbm_to_vmem [thread:$0]  %s9, 2048, %s418, [#allocation14], 64, 64, 4
        $region48: #{tpu_custom_call.1} parent=11 // pred_fallthru
          _
        // Predicated region
        $region49: #{tpu_custom_call.1} parent=11 // pred_check
          %p424 = pneg %p264
        $region50: #{tpu_custom_call.1} parent=11 // pred_check_branch
          %426 = sbr.rel (%p424) target = $region52
        $region51: #{tpu_custom_call.1} parent=11 // pred_region
          _
        $region52: #{tpu_custom_call.1} parent=11 // pred_fallthru
          _
        // Predicated region
        $region53: #{tpu_custom_call.1} parent=11 // pred_check
          %p427 = pneg %p285
        $region54: #{tpu_custom_call.1} parent=11 // pred_check_branch
          %429 = sbr.rel (%p427) target = $region56
        $region55: #{tpu_custom_call.1} parent=11 // pred_region
          %s431 = ssub.s32 1024, 1024
          %432 = vsyncadd [#allocation14], %s431
          %s433 = sshll.u32 [#allocation15], 4
          %s434 = int_to_ptr.vmem [resolvable:$true] %s433
          %439 = dma.hbm_to_vmem [thread:$0]  %s11, 1024, %s434, [#allocation14], 64, 64, 4
        $region56: #{tpu_custom_call.1} parent=11 // pred_fallthru
          _
        // Predicated region
        $region57: #{tpu_custom_call.1} parent=11 // pred_check
          %p440 = pneg %p306
        $region58: #{tpu_custom_call.1} parent=11 // pred_check_branch
          %442 = sbr.rel (%p440) target = $region60
        $region59: #{tpu_custom_call.1} parent=11 // pred_region
          _
        $region60: #{tpu_custom_call.1} parent=11 // pred_fallthru
          _
      $region12: #{tpu_custom_call.1} parent=5 // pred_fallthru
        _
      %p443 = scmp.lt.s32.totalorder %s28, 2
      // Predicated region
      $region61: #{tpu_custom_call.1} parent=5 // pred_check
        %p444 = pneg %p443
      $region62: #{tpu_custom_call.1} parent=5 // pred_check_branch
        %446 = sbr.rel (%p444) target = $region64
      $region63: #{tpu_custom_call.1} parent=5 // pred_region
        // Predicated region
        $region65: #{tpu_custom_call.1} parent=63 // pred_check
          %p447 = pneg %p48
        $region66: #{tpu_custom_call.1} parent=63 // pred_check_branch
          %449 = sbr.rel (%p447) target = $region68
        $region67: #{tpu_custom_call.1} parent=63 // pred_region
          %s450 = sand.u32 %s38, 1
          %s451 = scalar_lea.sflag [#allocation5], %s450
          %s452 = sand.u32 %s38, 1
          %s453 = smul.addr %s452, 16
          %s454 = scalar_lea.vmem [#allocation4], %s453
          %s456 = ssub.s32 256, 256
          %457 = vsyncadd %s451, %s456
          %s458 = smul.addr %s28, 2
          %s459 = smul.addr %s458, 128
          %s460 = scalar_lea.hbm %s0, %s459
          %s461 = sshll.u32 %s454, 4
          %s462 = int_to_ptr.vmem [resolvable:$true] %s461
          %467 = dma.hbm_to_vmem [thread:$0]  %s460, 256, %s462, %s451, 128, 128, 8
        $region68: #{tpu_custom_call.1} parent=63 // pred_fallthru
          _
      $region64: #{tpu_custom_call.1} parent=5 // pred_fallthru
        _
      %p468 = scmp.le.s32.totalorder 1, %s28
      %p469 = scmp.lt.s32.totalorder %s28, 3
      %p470 = pnand %p468, %p469
      %p471 = pneg %p470
      // Predicated region
      $region69: #{tpu_custom_call.1} parent=5 // pred_check
        _
      $region70: #{tpu_custom_call.1} parent=5 // pred_check_branch
        %473 = sbr.rel (%p470) target = $region72
      $region71: #{tpu_custom_call.1} parent=5 // pred_region
        %s474 = ssub.s32 %s28, 1
        %s475 = sand.u32 %s41, 1
        %s476 = scalar_lea.sflag [#allocation5], %s475
        %s477 = sand.u32 %s41, 1
        %s478 = smul.addr %s477, 16
        %s479 = scalar_lea.vmem [#allocation4], %s478
        // Predicated region
        $region73: #{tpu_custom_call.1} parent=71 // pred_check
          %p480 = pneg %p54
        $region74: #{tpu_custom_call.1} parent=71 // pred_check_branch
          %482 = sbr.rel (%p480) target = $region76
        $region75: #{tpu_custom_call.1} parent=71 // pred_region
          %483 = dma.done %s476, 256
        $region76: #{tpu_custom_call.1} parent=71 // pred_fallthru
          _
        // Predicated region
        $region77: #{tpu_custom_call.1} parent=71 // pred_check
          %p484 = pneg %p75
        $region78: #{tpu_custom_call.1} parent=71 // pred_check_branch
          %486 = sbr.rel (%p484) target = $region80
        $region79: #{tpu_custom_call.1} parent=71 // pred_region
          %487 = dma.done [#allocation8], 2048
        $region80: #{tpu_custom_call.1} parent=71 // pred_fallthru
          _
        // Predicated region
        $region81: #{tpu_custom_call.1} parent=71 // pred_check
          %p488 = pneg %p117
        $region82: #{tpu_custom_call.1} parent=71 // pred_check_branch
          %490 = sbr.rel (%p488) target = $region84
        $region83: #{tpu_custom_call.1} parent=71 // pred_region
          %491 = dma.done [#allocation8], 2048
        $region84: #{tpu_custom_call.1} parent=71 // pred_fallthru
          _
        // Predicated region
        $region85: #{tpu_custom_call.1} parent=71 // pred_check
          %p492 = pneg %p159
        $region86: #{tpu_custom_call.1} parent=71 // pred_check_branch
          %494 = sbr.rel (%p492) target = $region88
        $region87: #{tpu_custom_call.1} parent=71 // pred_region
          %495 = dma.done [#allocation11], 1024
        $region88: #{tpu_custom_call.1} parent=71 // pred_fallthru
          _
        // Predicated region
        $region89: #{tpu_custom_call.1} parent=71 // pred_check
          %p496 = pneg %p201
        $region90: #{tpu_custom_call.1} parent=71 // pred_check_branch
          %498 = sbr.rel (%p496) target = $region92
        $region91: #{tpu_custom_call.1} parent=71 // pred_region
          %499 = dma.done [#allocation11], 2048
        $region92: #{tpu_custom_call.1} parent=71 // pred_fallthru
          _
        // Predicated region
        $region93: #{tpu_custom_call.1} parent=71 // pred_check
          %p500 = pneg %p243
        $region94: #{tpu_custom_call.1} parent=71 // pred_check_branch
          %502 = sbr.rel (%p500) target = $region96
        $region95: #{tpu_custom_call.1} parent=71 // pred_region
          %503 = dma.done [#allocation14], 2048
        $region96: #{tpu_custom_call.1} parent=71 // pred_fallthru
          _
        // Predicated region
        $region97: #{tpu_custom_call.1} parent=71 // pred_check
          %p504 = pneg %p285
        $region98: #{tpu_custom_call.1} parent=71 // pred_check_branch
          %506 = sbr.rel (%p504) target = $region100
        $region99: #{tpu_custom_call.1} parent=71 // pred_region
          %507 = dma.done [#allocation14], 1024
        $region100: #{tpu_custom_call.1} parent=71 // pred_fallthru
          _
        %s508 = sand.u32 %s41, 1
        %s509 = scalar_lea.sflag [#allocation5], %s508
        %s510 = sand.u32 %s41, 1
        %s511 = smul.addr %s510, 16
        %s512 = scalar_lea.vmem [#allocation4], %s511
        %p513 = pneg %p54
        %p514 = pneg %p51
        %p515 = pneg %p75
        %p516 = pneg %p72
        %p517 = pneg %p96
        %p518 = pneg %p93
        %p519 = pneg %p117
        %p520 = pneg %p114
        %p521 = pneg %p138
        %p522 = pneg %p135
        %p523 = pneg %p159
        %p524 = pneg %p156
        %p525 = pneg %p180
        %p526 = pneg %p177
        %p527 = pneg %p201
        %p528 = pneg %p198
        %p529 = pneg %p222
        %p530 = pneg %p219
        %p531 = pneg %p243
        %p532 = pneg %p240
        %p533 = pneg %p264
        %p534 = pneg %p261
        %p535 = pneg %p285
        %p536 = pneg %p282
        %p537 = pneg %p306
        %p538 = pneg %p303
        %p539 = pneg %p332
        %p540 = pneg %p329
        %s541 = sand.u32 %s319, 1
        %s542 = scalar_lea.sflag [#allocation6], %s541
        %s543 = sand.u32 %s319, 1
        %s544 = smul.addr %s543, 4
        %s545 = scalar_lea.vmem [#allocation16], %s544
        %547 = vst [vmem:[#allocation2] sm:$0xff] 0.0
        %548 = vst [vmem:[#allocation3] sm:$0xff] 0.0
        %v549 = vld [vmem:[%s479] sm:$0xff]
        %v550 = vld [vmem:[%s479 + $0x8] sm:$0xff]
        %551 = vst [vmem:[#allocation2 + $0x8] sm:$0xff] %v549
        %552 = vst [vmem:[#allocation2 + $0x10] sm:$0xff] %v550
        %v553 = vld [vmem:[#allocation2 + $0x7] sm:$0xff]
        %v554 = vld [vmem:[#allocation2 + $0xf] sm:$0xff]
        %v555 = vld [vmem:[#allocation2 + $0x8] sm:$0xff]
        %v556 = vld [vmem:[#allocation2 + $0x10] sm:$0xff]
        %v557 = vpack.c.bf16 %v554, %v553
        %v558 = vpack.c.bf16 %v556, %v555
        %v559 = vld [vmem:[#allocation7] sm:$0xf]
        %v560 = vld [vmem:[#allocation7 + $0x4] sm:$0xf]
        %v561 = vld [vmem:[#allocation7 + $0x8] sm:$0xf]
        %v562 = vld [vmem:[#allocation7 + $0xc] sm:$0xf]
        %v563 = vld [vmem:[#allocation7 + $0x10] sm:$0xf]
        %v564 = vld [vmem:[#allocation7 + $0x14] sm:$0xf]
        %v565 = vld [vmem:[#allocation7 + $0x18] sm:$0xf]
        %v566 = vld [vmem:[#allocation7 + $0x1c] sm:$0xf]
        %v567 = vld [vmem:[#allocation7 + $0x20] sm:$0xf]
        %v568 = vld [vmem:[#allocation7 + $0x24] sm:$0xf]
        %v569 = vld [vmem:[#allocation7 + $0x28] sm:$0xf]
        %v570 = vld [vmem:[#allocation7 + $0x2c] sm:$0xf]
        %v571 = vld [vmem:[#allocation7 + $0x30] sm:$0xf]
        %v572 = vld [vmem:[#allocation7 + $0x34] sm:$0xf]
        %v573 = vld [vmem:[#allocation7 + $0x38] sm:$0xf]
        %v574 = vld [vmem:[#allocation7 + $0x3c] sm:$0xf]
        %v575 = vld [vmem:[#allocation7 + $0x40] sm:$0xf]
        %v576 = vld [vmem:[#allocation7 + $0x44] sm:$0xf]
        %v577 = vld [vmem:[#allocation7 + $0x48] sm:$0xf]
        %v578 = vld [vmem:[#allocation7 + $0x4c] sm:$0xf]
        %v579 = vld [vmem:[#allocation7 + $0x50] sm:$0xf]
        %v580 = vld [vmem:[#allocation7 + $0x54] sm:$0xf]
        %v581 = vld [vmem:[#allocation7 + $0x58] sm:$0xf]
        %v582 = vld [vmem:[#allocation7 + $0x5c] sm:$0xf]
        %v583 = vld [vmem:[#allocation7 + $0x60] sm:$0xf]
        %v584 = vld [vmem:[#allocation7 + $0x64] sm:$0xf]
        %v585 = vld [vmem:[#allocation7 + $0x68] sm:$0xf]
        %v586 = vld [vmem:[#allocation7 + $0x6c] sm:$0xf]
        %v587 = vld [vmem:[#allocation7 + $0x70] sm:$0xf]
        %v588 = vld [vmem:[#allocation7 + $0x74] sm:$0xf]
        %v589 = vld [vmem:[#allocation7 + $0x78] sm:$0xf]
        %v590 = vld [vmem:[#allocation7 + $0x7c] sm:$0xf]
        %v591 = vld [vmem:[%s2] sm:$0x1]
        %v593 = vlaneseq
        %v594 = vshrl.u32 %v593, 7
        %v595 = vsub.s32 0, %v594
        %v596 = vrot.slane %v591, %v595
        %v630 = vunpack.c.l.b16 %v559
        %v631 = vunpack.c.l.b16 %v560
        %v632 = vunpack.c.l.b16 %v561
        %v633 = vunpack.c.l.b16 %v562
        %v634 = vunpack.c.l.b16 %v563
        %v635 = vunpack.c.l.b16 %v564
        %v636 = vunpack.c.l.b16 %v565
        %v637 = vunpack.c.l.b16 %v566
        %v638 = vunpack.c.l.b16 %v567
        %v639 = vunpack.c.l.b16 %v568
        %v640 = vunpack.c.l.b16 %v569
        %v641 = vunpack.c.l.b16 %v570
        %v642 = vunpack.c.l.b16 %v571
        %v643 = vunpack.c.l.b16 %v572
        %v644 = vunpack.c.l.b16 %v573
        %v645 = vunpack.c.l.b16 %v574
        %v646 = vunpack.c.l.b16 %v575
        %v647 = vunpack.c.l.b16 %v576
        %v648 = vunpack.c.l.b16 %v577
        %v649 = vunpack.c.l.b16 %v578
        %v650 = vunpack.c.l.b16 %v579
        %v651 = vunpack.c.l.b16 %v580
        %v652 = vunpack.c.l.b16 %v581
        %v653 = vunpack.c.l.b16 %v582
        %v654 = vunpack.c.l.b16 %v583
        %v655 = vunpack.c.l.b16 %v584
        %v656 = vunpack.c.l.b16 %v585
        %v657 = vunpack.c.l.b16 %v586
        %v658 = vunpack.c.l.b16 %v587
        %v659 = vunpack.c.l.b16 %v588
        %v660 = vunpack.c.l.b16 %v589
        %v661 = vunpack.c.l.b16 %v590
        %v662 = vpack.c.b16 %v631, %v630
        %v663 = vpack.c.b16 %v633, %v632
        %v664 = vpack.c.b16 %v635, %v634
        %v665 = vpack.c.b16 %v637, %v636
        %v666 = vpack.c.b16 %v639, %v638
        %v667 = vpack.c.b16 %v641, %v640
        %v668 = vpack.c.b16 %v643, %v642
        %v669 = vpack.c.b16 %v645, %v644
        %v670 = vpack.c.b16 %v647, %v646
        %v671 = vpack.c.b16 %v649, %v648
        %v672 = vpack.c.b16 %v651, %v650
        %v673 = vpack.c.b16 %v653, %v652
        %v674 = vpack.c.b16 %v655, %v654
        %v675 = vpack.c.b16 %v657, %v656
        %v676 = vpack.c.b16 %v659, %v658
        %v677 = vpack.c.b16 %v661, %v660
        %694 = vmatprep.subr.bf16.mxu0 0
        %695 = vmatpush1.bf16.msra.mxu0 %v662
        %696 = vmatprep.subr.bf16.mxu0 0
        %697 = vmatpush1.bf16.msra.mxu0 %v663
        %698 = vmatprep.subr.bf16.mxu0 0
        %699 = vmatpush1.bf16.msra.mxu0 %v664
        %700 = vmatprep.subr.bf16.mxu0 0
        %701 = vmatpush1.bf16.msra.mxu0 %v665
        %702 = vmatprep.subr.bf16.mxu0 0
        %703 = vmatpush1.bf16.msra.mxu0 %v666
        %704 = vmatprep.subr.bf16.mxu0 0
        %705 = vmatpush1.bf16.msra.mxu0 %v667
        %706 = vmatprep.subr.bf16.mxu0 0
        %707 = vmatpush1.bf16.msra.mxu0 %v668
        %708 = vmatprep.subr.bf16.mxu0 0
        %709 = vmatpush1.bf16.msra.mxu0 %v669
        %710 = vmatprep.subr.bf16.mxu0 0
        %711 = vmatpush1.bf16.msra.mxu0 %v670
        %712 = vmatprep.subr.bf16.mxu0 0
        %713 = vmatpush1.bf16.msra.mxu0 %v671
        %714 = vmatprep.subr.bf16.mxu0 0
        %715 = vmatpush1.bf16.msra.mxu0 %v672
        %716 = vmatprep.subr.bf16.mxu0 0
        %717 = vmatpush1.bf16.msra.mxu0 %v673
        %718 = vmatprep.subr.bf16.mxu0 0
        %719 = vmatpush1.bf16.msra.mxu0 %v674
        %720 = vmatprep.subr.bf16.mxu0 0
        %721 = vmatpush1.bf16.msra.mxu0 %v675
        %722 = vmatprep.subr.bf16.mxu0 0
        %723 = vmatpush1.bf16.msra.mxu0 %v676
        %724 = vmatprep.subr.bf16.mxu0 0
        %725 = vmatpush1.bf16.msra.mxu0 %v677
        %726 = vmatprep.mubr.bf16.mxu0 %v558
        %727 = vmatmul.mubr.bf16.gmra.mrb[0].mxu0 %v557
        %v728 = vpop.f32.mrb[0].mxu0
        %v729 = vadd.f32 %v596, %v728
        %v730 = vpop.f32.mrb[0].mxu0
        %v731 = vpop.f32.mrb[0].mxu0
        %v732 = vadd.f32 %v596, %v731
        %v733 = vpop.f32.mrb[0].mxu0
        %734 = vdwg.mxu0
        %v735 = vmax.f32 %v729, 0.0
        %v736 = vmax.f32 %v732, 0.0
        %737 = vst [vmem:[#allocation3 + $0x8] sm:$0xff] %v735
        %738 = vst [vmem:[#allocation3 + $0x10] sm:$0xff] %v736
        %v739 = vld [vmem:[#allocation3 + $0x7] sm:$0xff]
        %v740 = vld [vmem:[#allocation3 + $0xf] sm:$0xff]
        %v741 = vld [vmem:[#allocation3 + $0x8] sm:$0xff]
        %v742 = vld [vmem:[#allocation3 + $0x10] sm:$0xff]
        %v743 = vpack.c.bf16 %v740, %v739
        %v744 = vpack.c.bf16 %v742, %v741
        %v745 = vld [vmem:[#allocation9] sm:$0xf]
        %v746 = vld [vmem:[#allocation9 + $0x4] sm:$0xf]
        %v747 = vld [vmem:[#allocation9 + $0x8] sm:$0xf]
        %v748 = vld [vmem:[#allocation9 + $0xc] sm:$0xf]
        %v749 = vld [vmem:[#allocation9 + $0x10] sm:$0xf]
        %v750 = vld [vmem:[#allocation9 + $0x14] sm:$0xf]
        %v751 = vld [vmem:[#allocation9 + $0x18] sm:$0xf]
        %v752 = vld [vmem:[#allocation9 + $0x1c] sm:$0xf]
        %v753 = vld [vmem:[#allocation9 + $0x20] sm:$0xf]
        %v754 = vld [vmem:[#allocation9 + $0x24] sm:$0xf]
        %v755 = vld [vmem:[#allocation9 + $0x28] sm:$0xf]
        %v756 = vld [vmem:[#allocation9 + $0x2c] sm:$0xf]
        %v757 = vld [vmem:[#allocation9 + $0x30] sm:$0xf]
        %v758 = vld [vmem:[#allocation9 + $0x34] sm:$0xf]
        %v759 = vld [vmem:[#allocation9 + $0x38] sm:$0xf]
        %v760 = vld [vmem:[#allocation9 + $0x3c] sm:$0xf]
        %v761 = vld [vmem:[#allocation9 + $0x40] sm:$0xf]
        %v762 = vld [vmem:[#allocation9 + $0x44] sm:$0xf]
        %v763 = vld [vmem:[#allocation9 + $0x48] sm:$0xf]
        %v764 = vld [vmem:[#allocation9 + $0x4c] sm:$0xf]
        %v765 = vld [vmem:[#allocation9 + $0x50] sm:$0xf]
        %v766 = vld [vmem:[#allocation9 + $0x54] sm:$0xf]
        %v767 = vld [vmem:[#allocation9 + $0x58] sm:$0xf]
        %v768 = vld [vmem:[#allocation9 + $0x5c] sm:$0xf]
        %v769 = vld [vmem:[#allocation9 + $0x60] sm:$0xf]
        %v770 = vld [vmem:[#allocation9 + $0x64] sm:$0xf]
        %v771 = vld [vmem:[#allocation9 + $0x68] sm:$0xf]
        %v772 = vld [vmem:[#allocation9 + $0x6c] sm:$0xf]
        %v773 = vld [vmem:[#allocation9 + $0x70] sm:$0xf]
        %v774 = vld [vmem:[#allocation9 + $0x74] sm:$0xf]
        %v775 = vld [vmem:[#allocation9 + $0x78] sm:$0xf]
        %v776 = vld [vmem:[#allocation9 + $0x7c] sm:$0xf]
        %v777 = vld [vmem:[%s4] sm:$0x1]
        %v779 = vlaneseq
        %v780 = vshrl.u32 %v779, 7
        %v781 = vsub.s32 0, %v780
        %v782 = vrot.slane %v777, %v781
        %v816 = vunpack.c.l.b16 %v745
        %v817 = vunpack.c.l.b16 %v746
        %v818 = vunpack.c.l.b16 %v747
        %v819 = vunpack.c.l.b16 %v748
        %v820 = vunpack.c.l.b16 %v749
        %v821 = vunpack.c.l.b16 %v750
        %v822 = vunpack.c.l.b16 %v751
        %v823 = vunpack.c.l.b16 %v752
        %v824 = vunpack.c.l.b16 %v753
        %v825 = vunpack.c.l.b16 %v754
        %v826 = vunpack.c.l.b16 %v755
        %v827 = vunpack.c.l.b16 %v756
        %v828 = vunpack.c.l.b16 %v757
        %v829 = vunpack.c.l.b16 %v758
        %v830 = vunpack.c.l.b16 %v759
        %v831 = vunpack.c.l.b16 %v760
        %v832 = vunpack.c.l.b16 %v761
        %v833 = vunpack.c.l.b16 %v762
        %v834 = vunpack.c.l.b16 %v763
        %v835 = vunpack.c.l.b16 %v764
        %v836 = vunpack.c.l.b16 %v765
        %v837 = vunpack.c.l.b16 %v766
        %v838 = vunpack.c.l.b16 %v767
        %v839 = vunpack.c.l.b16 %v768
        %v840 = vunpack.c.l.b16 %v769
        %v841 = vunpack.c.l.b16 %v770
        %v842 = vunpack.c.l.b16 %v771
        %v843 = vunpack.c.l.b16 %v772
        %v844 = vunpack.c.l.b16 %v773
        %v845 = vunpack.c.l.b16 %v774
        %v846 = vunpack.c.l.b16 %v775
        %v847 = vunpack.c.l.b16 %v776
        %v848 = vpack.c.b16 %v817, %v816
        %v849 = vpack.c.b16 %v819, %v818
        %v850 = vpack.c.b16 %v821, %v820
        %v851 = vpack.c.b16 %v823, %v822
        %v852 = vpack.c.b16 %v825, %v824
        %v853 = vpack.c.b16 %v827, %v826
        %v854 = vpack.c.b16 %v829, %v828
        %v855 = vpack.c.b16 %v831, %v830
        %v856 = vpack.c.b16 %v833, %v832
        %v857 = vpack.c.b16 %v835, %v834
        %v858 = vpack.c.b16 %v837, %v836
        %v859 = vpack.c.b16 %v839, %v838
        %v860 = vpack.c.b16 %v841, %v840
        %v861 = vpack.c.b16 %v843, %v842
        %v862 = vpack.c.b16 %v845, %v844
        %v863 = vpack.c.b16 %v847, %v846
        %880 = vmatprep.subr.bf16.mxu0 0
        %881 = vmatpush1.bf16.msra.mxu0 %v848
        %882 = vmatprep.subr.bf16.mxu0 0
        %883 = vmatpush1.bf16.msra.mxu0 %v849
        %884 = vmatprep.subr.bf16.mxu0 0
        %885 = vmatpush1.bf16.msra.mxu0 %v850
        %886 = vmatprep.subr.bf16.mxu0 0
        %887 = vmatpush1.bf16.msra.mxu0 %v851
        %888 = vmatprep.subr.bf16.mxu0 0
        %889 = vmatpush1.bf16.msra.mxu0 %v852
        %890 = vmatprep.subr.bf16.mxu0 0
        %891 = vmatpush1.bf16.msra.mxu0 %v853
        %892 = vmatprep.subr.bf16.mxu0 0
        %893 = vmatpush1.bf16.msra.mxu0 %v854
        %894 = vmatprep.subr.bf16.mxu0 0
        %895 = vmatpush1.bf16.msra.mxu0 %v855
        %896 = vmatprep.subr.bf16.mxu0 0
        %897 = vmatpush1.bf16.msra.mxu0 %v856
        %898 = vmatprep.subr.bf16.mxu0 0
        %899 = vmatpush1.bf16.msra.mxu0 %v857
        %900 = vmatprep.subr.bf16.mxu0 0
        %901 = vmatpush1.bf16.msra.mxu0 %v858
        %902 = vmatprep.subr.bf16.mxu0 0
        %903 = vmatpush1.bf16.msra.mxu0 %v859
        %904 = vmatprep.subr.bf16.mxu0 0
        %905 = vmatpush1.bf16.msra.mxu0 %v860
        %906 = vmatprep.subr.bf16.mxu0 0
        %907 = vmatpush1.bf16.msra.mxu0 %v861
        %908 = vmatprep.subr.bf16.mxu0 0
        %909 = vmatpush1.bf16.msra.mxu0 %v862
        %910 = vmatprep.subr.bf16.mxu0 0
        %911 = vmatpush1.bf16.msra.mxu0 %v863
        %912 = vmatprep.mubr.bf16.mxu0 %v744
        %913 = vmatmul.mubr.bf16.gmra.mrb[0].mxu0 %v743
        %v914 = vpop.f32.mrb[0].mxu0
        %v915 = vadd.f32 %v782, %v914
        %v916 = vpop.f32.mrb[0].mxu0
        %v917 = vpop.f32.mrb[0].mxu0
        %v918 = vadd.f32 %v782, %v917
        %v919 = vpop.f32.mrb[0].mxu0
        %920 = vdwg.mxu0
        %v921 = vmax.f32 %v915, 0.0
        %v922 = vmax.f32 %v918, 0.0
        %v923 = vld [vmem:[#allocation2 + $0x8] sm:$0xff]
        %v924 = vld [vmem:[#allocation2 + $0x10] sm:$0xff]
        %v925 = vpack.c.bf16 %v924, %v923
        %v926 = vld [vmem:[#allocation10] sm:$0xf]
        %v927 = vld [vmem:[#allocation10 + $0x4] sm:$0xf]
        %v928 = vld [vmem:[#allocation10 + $0x8] sm:$0xf]
        %v929 = vld [vmem:[#allocation10 + $0xc] sm:$0xf]
        %v930 = vld [vmem:[#allocation10 + $0x10] sm:$0xf]
        %v931 = vld [vmem:[#allocation10 + $0x14] sm:$0xf]
        %v932 = vld [vmem:[#allocation10 + $0x18] sm:$0xf]
        %v933 = vld [vmem:[#allocation10 + $0x1c] sm:$0xf]
        %v934 = vld [vmem:[#allocation10 + $0x20] sm:$0xf]
        %v935 = vld [vmem:[#allocation10 + $0x24] sm:$0xf]
        %v936 = vld [vmem:[#allocation10 + $0x28] sm:$0xf]
        %v937 = vld [vmem:[#allocation10 + $0x2c] sm:$0xf]
        %v938 = vld [vmem:[#allocation10 + $0x30] sm:$0xf]
        %v939 = vld [vmem:[#allocation10 + $0x34] sm:$0xf]
        %v940 = vld [vmem:[#allocation10 + $0x38] sm:$0xf]
        %v941 = vld [vmem:[#allocation10 + $0x3c] sm:$0xf]
        %v942 = vld [vmem:[%s6] sm:$0x1]
        %v944 = vlaneseq
        %v945 = vshrl.u32 %v944, 7
        %v946 = vsub.s32 0, %v945
        %v947 = vrot.slane %v942, %v946
        %v965 = vunpack.c.l.b16 %v926
        %v966 = vunpack.c.l.b16 %v927
        %v967 = vunpack.c.l.b16 %v928
        %v968 = vunpack.c.l.b16 %v929
        %v969 = vunpack.c.l.b16 %v930
        %v970 = vunpack.c.l.b16 %v931
        %v971 = vunpack.c.l.b16 %v932
        %v972 = vunpack.c.l.b16 %v933
        %v973 = vunpack.c.l.b16 %v934
        %v974 = vunpack.c.l.b16 %v935
        %v975 = vunpack.c.l.b16 %v936
        %v976 = vunpack.c.l.b16 %v937
        %v977 = vunpack.c.l.b16 %v938
        %v978 = vunpack.c.l.b16 %v939
        %v979 = vunpack.c.l.b16 %v940
        %v980 = vunpack.c.l.b16 %v941
        %v981 = vpack.c.b16 %v966, %v965
        %v982 = vpack.c.b16 %v968, %v967
        %v983 = vpack.c.b16 %v970, %v969
        %v984 = vpack.c.b16 %v972, %v971
        %v985 = vpack.c.b16 %v974, %v973
        %v986 = vpack.c.b16 %v976, %v975
        %v987 = vpack.c.b16 %v978, %v977
        %v988 = vpack.c.b16 %v980, %v979
        %997 = vmatprep.subr.bf16.mxu0 0
        %998 = vmatpush1.bf16.msra.mxu0 %v981
        %999 = vmatprep.subr.bf16.mxu0 0
        %1000 = vmatpush1.bf16.msra.mxu0 %v982
        %1001 = vmatprep.subr.bf16.mxu0 0
        %1002 = vmatpush1.bf16.msra.mxu0 %v983
        %1003 = vmatprep.subr.bf16.mxu0 0
        %1004 = vmatpush1.bf16.msra.mxu0 %v984
        %1005 = vmatprep.subr.bf16.mxu0 0
        %1006 = vmatpush1.bf16.msra.mxu0 %v985
        %1007 = vmatprep.subr.bf16.mxu0 0
        %1008 = vmatpush1.bf16.msra.mxu0 %v986
        %1009 = vmatprep.subr.bf16.mxu0 0
        %1010 = vmatpush1.bf16.msra.mxu0 %v987
        %1011 = vmatprep.subr.bf16.mxu0 0
        %1012 = vmatpush1.bf16.msra.mxu0 %v988
        %1013 = vmatprep.subr.bf16.mxu0 0
        %1014 = vmatpush1.bf16.msra.mxu0 0
        %1015 = vmatprep.subr.bf16.mxu0 0
        %1016 = vmatpush1.bf16.msra.mxu0 0
        %1017 = vmatprep.subr.bf16.mxu0 0
        %1018 = vmatpush1.bf16.msra.mxu0 0
        %1019 = vmatprep.subr.bf16.mxu0 0
        %1020 = vmatpush1.bf16.msra.mxu0 0
        %1021 = vmatprep.subr.bf16.mxu0 0
        %1022 = vmatpush1.bf16.msra.mxu0 0
        %1023 = vmatprep.subr.bf16.mxu0 0
        %1024 = vmatpush1.bf16.msra.mxu0 0
        %1025 = vmatprep.subr.bf16.mxu0 0
        %1026 = vmatpush1.bf16.msra.mxu0 0
        %1027 = vmatprep.subr.bf16.mxu0 0
        %1028 = vmatpush1.bf16.msra.mxu0 0
        %1029 = vmatprep.mubr.bf16.mxu0 0
        %1030 = vmatmul.mubr.bf16.gmra.mrb[0].mxu0 %v925
        %v1031 = vpop.f32.mrb[0].mxu0
        %v1032 = vadd.f32 %v947, %v1031
        %v1033 = vpop.f32.mrb[0].mxu0
        %v1034 = vpop.f32.mrb[0].mxu0
        %v1035 = vadd.f32 %v947, %v1034
        %v1036 = vpop.f32.mrb[0].mxu0
        %1037 = vdwg.mxu0
        %v1038 = vadd.f32 %v921, %v1032
        %v1039 = vadd.f32 %v922, %v1035
        %v1040 = vmax.f32 %v1038, 0.0
        %v1041 = vmax.f32 %v1039, 0.0
        %1042 = vst [vmem:[#allocation2 + $0x8] sm:$0xff] %v1040
        %1043 = vst [vmem:[#allocation2 + $0x10] sm:$0xff] %v1041
        %v1044 = vld [vmem:[#allocation2 + $0x6] sm:$0xff]
        %v1045 = vld [vmem:[#allocation2 + $0xe] sm:$0xff]
        %v1046 = vld [vmem:[#allocation2 + $0x8] sm:$0xff]
        %v1047 = vld [vmem:[#allocation2 + $0x10] sm:$0xff]
        %v1048 = vpack.c.bf16 %v1045, %v1044
        %v1049 = vpack.c.bf16 %v1047, %v1046
        %v1050 = vld [vmem:[#allocation12] sm:$0xf]
        %v1051 = vld [vmem:[#allocation12 + $0x4] sm:$0xf]
        %v1052 = vld [vmem:[#allocation12 + $0x8] sm:$0xf]
        %v1053 = vld [vmem:[#allocation12 + $0xc] sm:$0xf]
        %v1054 = vld [vmem:[#allocation12 + $0x10] sm:$0xf]
        %v1055 = vld [vmem:[#allocation12 + $0x14] sm:$0xf]
        %v1056 = vld [vmem:[#allocation12 + $0x18] sm:$0xf]
        %v1057 = vld [vmem:[#allocation12 + $0x1c] sm:$0xf]
        %v1058 = vld [vmem:[#allocation12 + $0x20] sm:$0xf]
        %v1059 = vld [vmem:[#allocation12 + $0x24] sm:$0xf]
        %v1060 = vld [vmem:[#allocation12 + $0x28] sm:$0xf]
        %v1061 = vld [vmem:[#allocation12 + $0x2c] sm:$0xf]
        %v1062 = vld [vmem:[#allocation12 + $0x30] sm:$0xf]
        %v1063 = vld [vmem:[#allocation12 + $0x34] sm:$0xf]
        %v1064 = vld [vmem:[#allocation12 + $0x38] sm:$0xf]
        %v1065 = vld [vmem:[#allocation12 + $0x3c] sm:$0xf]
        %v1066 = vld [vmem:[#allocation12 + $0x40] sm:$0xf]
        %v1067 = vld [vmem:[#allocation12 + $0x44] sm:$0xf]
        %v1068 = vld [vmem:[#allocation12 + $0x48] sm:$0xf]
        %v1069 = vld [vmem:[#allocation12 + $0x4c] sm:$0xf]
        %v1070 = vld [vmem:[#allocation12 + $0x50] sm:$0xf]
        %v1071 = vld [vmem:[#allocation12 + $0x54] sm:$0xf]
        %v1072 = vld [vmem:[#allocation12 + $0x58] sm:$0xf]
        %v1073 = vld [vmem:[#allocation12 + $0x5c] sm:$0xf]
        %v1074 = vld [vmem:[#allocation12 + $0x60] sm:$0xf]
        %v1075 = vld [vmem:[#allocation12 + $0x64] sm:$0xf]
        %v1076 = vld [vmem:[#allocation12 + $0x68] sm:$0xf]
        %v1077 = vld [vmem:[#allocation12 + $0x6c] sm:$0xf]
        %v1078 = vld [vmem:[#allocation12 + $0x70] sm:$0xf]
        %v1079 = vld [vmem:[#allocation12 + $0x74] sm:$0xf]
        %v1080 = vld [vmem:[#allocation12 + $0x78] sm:$0xf]
        %v1081 = vld [vmem:[#allocation12 + $0x7c] sm:$0xf]
        %v1082 = vld [vmem:[%s8] sm:$0x1]
        %v1084 = vlaneseq
        %v1085 = vshrl.u32 %v1084, 7
        %v1086 = vsub.s32 0, %v1085
        %v1087 = vrot.slane %v1082, %v1086
        %v1121 = vunpack.c.l.b16 %v1050
        %v1122 = vunpack.c.l.b16 %v1051
        %v1123 = vunpack.c.l.b16 %v1052
        %v1124 = vunpack.c.l.b16 %v1053
        %v1125 = vunpack.c.l.b16 %v1054
        %v1126 = vunpack.c.l.b16 %v1055
        %v1127 = vunpack.c.l.b16 %v1056
        %v1128 = vunpack.c.l.b16 %v1057
        %v1129 = vunpack.c.l.b16 %v1058
        %v1130 = vunpack.c.l.b16 %v1059
        %v1131 = vunpack.c.l.b16 %v1060
        %v1132 = vunpack.c.l.b16 %v1061
        %v1133 = vunpack.c.l.b16 %v1062
        %v1134 = vunpack.c.l.b16 %v1063
        %v1135 = vunpack.c.l.b16 %v1064
        %v1136 = vunpack.c.l.b16 %v1065
        %v1137 = vunpack.c.l.b16 %v1066
        %v1138 = vunpack.c.l.b16 %v1067
        %v1139 = vunpack.c.l.b16 %v1068
        %v1140 = vunpack.c.l.b16 %v1069
        %v1141 = vunpack.c.l.b16 %v1070
        %v1142 = vunpack.c.l.b16 %v1071
        %v1143 = vunpack.c.l.b16 %v1072
        %v1144 = vunpack.c.l.b16 %v1073
        %v1145 = vunpack.c.l.b16 %v1074
        %v1146 = vunpack.c.l.b16 %v1075
        %v1147 = vunpack.c.l.b16 %v1076
        %v1148 = vunpack.c.l.b16 %v1077
        %v1149 = vunpack.c.l.b16 %v1078
        %v1150 = vunpack.c.l.b16 %v1079
        %v1151 = vunpack.c.l.b16 %v1080
        %v1152 = vunpack.c.l.b16 %v1081
        %v1153 = vpack.c.b16 %v1122, %v1121
        %v1154 = vpack.c.b16 %v1124, %v1123
        %v1155 = vpack.c.b16 %v1126, %v1125
        %v1156 = vpack.c.b16 %v1128, %v1127
        %v1157 = vpack.c.b16 %v1130, %v1129
        %v1158 = vpack.c.b16 %v1132, %v1131
        %v1159 = vpack.c.b16 %v1134, %v1133
        %v1160 = vpack.c.b16 %v1136, %v1135
        %v1161 = vpack.c.b16 %v1138, %v1137
        %v1162 = vpack.c.b16 %v1140, %v1139
        %v1163 = vpack.c.b16 %v1142, %v1141
        %v1164 = vpack.c.b16 %v1144, %v1143
        %v1165 = vpack.c.b16 %v1146, %v1145
        %v1166 = vpack.c.b16 %v1148, %v1147
        %v1167 = vpack.c.b16 %v1150, %v1149
        %v1168 = vpack.c.b16 %v1152, %v1151
        %1185 = vmatprep.subr.bf16.mxu0 0
        %1186 = vmatpush1.bf16.msra.mxu0 %v1153
        %1187 = vmatprep.subr.bf16.mxu0 0
        %1188 = vmatpush1.bf16.msra.mxu0 %v1154
        %1189 = vmatprep.subr.bf16.mxu0 0
        %1190 = vmatpush1.bf16.msra.mxu0 %v1155
        %1191 = vmatprep.subr.bf16.mxu0 0
        %1192 = vmatpush1.bf16.msra.mxu0 %v1156
        %1193 = vmatprep.subr.bf16.mxu0 0
        %1194 = vmatpush1.bf16.msra.mxu0 %v1157
        %1195 = vmatprep.subr.bf16.mxu0 0
        %1196 = vmatpush1.bf16.msra.mxu0 %v1158
        %1197 = vmatprep.subr.bf16.mxu0 0
        %1198 = vmatpush1.bf16.msra.mxu0 %v1159
        %1199 = vmatprep.subr.bf16.mxu0 0
        %1200 = vmatpush1.bf16.msra.mxu0 %v1160
        %1201 = vmatprep.subr.bf16.mxu0 0
        %1202 = vmatpush1.bf16.msra.mxu0 %v1161
        %1203 = vmatprep.subr.bf16.mxu0 0
        %1204 = vmatpush1.bf16.msra.mxu0 %v1162
        %1205 = vmatprep.subr.bf16.mxu0 0
        %1206 = vmatpush1.bf16.msra.mxu0 %v1163
        %1207 = vmatprep.subr.bf16.mxu0 0
        %1208 = vmatpush1.bf16.msra.mxu0 %v1164
        %1209 = vmatprep.subr.bf16.mxu0 0
        %1210 = vmatpush1.bf16.msra.mxu0 %v1165
        %1211 = vmatprep.subr.bf16.mxu0 0
        %1212 = vmatpush1.bf16.msra.mxu0 %v1166
        %1213 = vmatprep.subr.bf16.mxu0 0
        %1214 = vmatpush1.bf16.msra.mxu0 %v1167
        %1215 = vmatprep.subr.bf16.mxu0 0
        %1216 = vmatpush1.bf16.msra.mxu0 %v1168
        %1217 = vmatprep.mubr.bf16.mxu0 %v1049
        %1218 = vmatmul.mubr.bf16.gmra.mrb[0].mxu0 %v1048
        %v1219 = vpop.f32.mrb[0].mxu0
        %v1220 = vadd.f32 %v1087, %v1219
        %v1221 = vpop.f32.mrb[0].mxu0
        %v1222 = vpop.f32.mrb[0].mxu0
        %v1223 = vadd.f32 %v1087, %v1222
        %v1224 = vpop.f32.mrb[0].mxu0
        %1225 = vdwg.mxu0
        %v1226 = vmax.f32 %v1220, 0.0
        %v1227 = vmax.f32 %v1223, 0.0
        %1228 = vst [vmem:[#allocation3 + $0x8] sm:$0xff] %v1226
        %1229 = vst [vmem:[#allocation3 + $0x10] sm:$0xff] %v1227
        %v1230 = vld [vmem:[#allocation3 + $0x6] sm:$0xff]
        %v1231 = vld [vmem:[#allocation3 + $0xe] sm:$0xff]
        %v1232 = vld [vmem:[#allocation3 + $0x8] sm:$0xff]
        %v1233 = vld [vmem:[#allocation3 + $0x10] sm:$0xff]
        %v1234 = vpack.c.bf16 %v1231, %v1230
        %v1235 = vpack.c.bf16 %v1233, %v1232
        %v1236 = vld [vmem:[#allocation13] sm:$0xf]
        %v1237 = vld [vmem:[#allocation13 + $0x4] sm:$0xf]
        %v1238 = vld [vmem:[#allocation13 + $0x8] sm:$0xf]
        %v1239 = vld [vmem:[#allocation13 + $0xc] sm:$0xf]
        %v1240 = vld [vmem:[#allocation13 + $0x10] sm:$0xf]
        %v1241 = vld [vmem:[#allocation13 + $0x14] sm:$0xf]
        %v1242 = vld [vmem:[#allocation13 + $0x18] sm:$0xf]
        %v1243 = vld [vmem:[#allocation13 + $0x1c] sm:$0xf]
        %v1244 = vld [vmem:[#allocation13 + $0x20] sm:$0xf]
        %v1245 = vld [vmem:[#allocation13 + $0x24] sm:$0xf]
        %v1246 = vld [vmem:[#allocation13 + $0x28] sm:$0xf]
        %v1247 = vld [vmem:[#allocation13 + $0x2c] sm:$0xf]
        %v1248 = vld [vmem:[#allocation13 + $0x30] sm:$0xf]
        %v1249 = vld [vmem:[#allocation13 + $0x34] sm:$0xf]
        %v1250 = vld [vmem:[#allocation13 + $0x38] sm:$0xf]
        %v1251 = vld [vmem:[#allocation13 + $0x3c] sm:$0xf]
        %v1252 = vld [vmem:[#allocation13 + $0x40] sm:$0xf]
        %v1253 = vld [vmem:[#allocation13 + $0x44] sm:$0xf]
        %v1254 = vld [vmem:[#allocation13 + $0x48] sm:$0xf]
        %v1255 = vld [vmem:[#allocation13 + $0x4c] sm:$0xf]
        %v1256 = vld [vmem:[#allocation13 + $0x50] sm:$0xf]
        %v1257 = vld [vmem:[#allocation13 + $0x54] sm:$0xf]
        %v1258 = vld [vmem:[#allocation13 + $0x58] sm:$0xf]
        %v1259 = vld [vmem:[#allocation13 + $0x5c] sm:$0xf]
        %v1260 = vld [vmem:[#allocation13 + $0x60] sm:$0xf]
        %v1261 = vld [vmem:[#allocation13 + $0x64] sm:$0xf]
        %v1262 = vld [vmem:[#allocation13 + $0x68] sm:$0xf]
        %v1263 = vld [vmem:[#allocation13 + $0x6c] sm:$0xf]
        %v1264 = vld [vmem:[#allocation13 + $0x70] sm:$0xf]
        %v1265 = vld [vmem:[#allocation13 + $0x74] sm:$0xf]
        %v1266 = vld [vmem:[#allocation13 + $0x78] sm:$0xf]
        %v1267 = vld [vmem:[#allocation13 + $0x7c] sm:$0xf]
        %v1268 = vld [vmem:[%s10] sm:$0x1]
        %v1270 = vlaneseq
        %v1271 = vshrl.u32 %v1270, 7
        %v1272 = vsub.s32 0, %v1271
        %v1273 = vrot.slane %v1268, %v1272
        %v1307 = vunpack.c.l.b16 %v1236
        %v1308 = vunpack.c.l.b16 %v1237
        %v1309 = vunpack.c.l.b16 %v1238
        %v1310 = vunpack.c.l.b16 %v1239
        %v1311 = vunpack.c.l.b16 %v1240
        %v1312 = vunpack.c.l.b16 %v1241
        %v1313 = vunpack.c.l.b16 %v1242
        %v1314 = vunpack.c.l.b16 %v1243
        %v1315 = vunpack.c.l.b16 %v1244
        %v1316 = vunpack.c.l.b16 %v1245
        %v1317 = vunpack.c.l.b16 %v1246
        %v1318 = vunpack.c.l.b16 %v1247
        %v1319 = vunpack.c.l.b16 %v1248
        %v1320 = vunpack.c.l.b16 %v1249
        %v1321 = vunpack.c.l.b16 %v1250
        %v1322 = vunpack.c.l.b16 %v1251
        %v1323 = vunpack.c.l.b16 %v1252
        %v1324 = vunpack.c.l.b16 %v1253
        %v1325 = vunpack.c.l.b16 %v1254
        %v1326 = vunpack.c.l.b16 %v1255
        %v1327 = vunpack.c.l.b16 %v1256
        %v1328 = vunpack.c.l.b16 %v1257
        %v1329 = vunpack.c.l.b16 %v1258
        %v1330 = vunpack.c.l.b16 %v1259
        %v1331 = vunpack.c.l.b16 %v1260
        %v1332 = vunpack.c.l.b16 %v1261
        %v1333 = vunpack.c.l.b16 %v1262
        %v1334 = vunpack.c.l.b16 %v1263
        %v1335 = vunpack.c.l.b16 %v1264
        %v1336 = vunpack.c.l.b16 %v1265
        %v1337 = vunpack.c.l.b16 %v1266
        %v1338 = vunpack.c.l.b16 %v1267
        %v1339 = vpack.c.b16 %v1308, %v1307
        %v1340 = vpack.c.b16 %v1310, %v1309
        %v1341 = vpack.c.b16 %v1312, %v1311
        %v1342 = vpack.c.b16 %v1314, %v1313
        %v1343 = vpack.c.b16 %v1316, %v1315
        %v1344 = vpack.c.b16 %v1318, %v1317
        %v1345 = vpack.c.b16 %v1320, %v1319
        %v1346 = vpack.c.b16 %v1322, %v1321
        %v1347 = vpack.c.b16 %v1324, %v1323
        %v1348 = vpack.c.b16 %v1326, %v1325
        %v1349 = vpack.c.b16 %v1328, %v1327
        %v1350 = vpack.c.b16 %v1330, %v1329
        %v1351 = vpack.c.b16 %v1332, %v1331
        %v1352 = vpack.c.b16 %v1334, %v1333
        %v1353 = vpack.c.b16 %v1336, %v1335
        %v1354 = vpack.c.b16 %v1338, %v1337
        %1371 = vmatprep.subr.bf16.mxu0 0
        %1372 = vmatpush1.bf16.msra.mxu0 %v1339
        %1373 = vmatprep.subr.bf16.mxu0 0
        %1374 = vmatpush1.bf16.msra.mxu0 %v1340
        %1375 = vmatprep.subr.bf16.mxu0 0
        %1376 = vmatpush1.bf16.msra.mxu0 %v1341
        %1377 = vmatprep.subr.bf16.mxu0 0
        %1378 = vmatpush1.bf16.msra.mxu0 %v1342
        %1379 = vmatprep.subr.bf16.mxu0 0
        %1380 = vmatpush1.bf16.msra.mxu0 %v1343
        %1381 = vmatprep.subr.bf16.mxu0 0
        %1382 = vmatpush1.bf16.msra.mxu0 %v1344
        %1383 = vmatprep.subr.bf16.mxu0 0
        %1384 = vmatpush1.bf16.msra.mxu0 %v1345
        %1385 = vmatprep.subr.bf16.mxu0 0
        %1386 = vmatpush1.bf16.msra.mxu0 %v1346
        %1387 = vmatprep.subr.bf16.mxu0 0
        %1388 = vmatpush1.bf16.msra.mxu0 %v1347
        %1389 = vmatprep.subr.bf16.mxu0 0
        %1390 = vmatpush1.bf16.msra.mxu0 %v1348
        %1391 = vmatprep.subr.bf16.mxu0 0
        %1392 = vmatpush1.bf16.msra.mxu0 %v1349
        %1393 = vmatprep.subr.bf16.mxu0 0
        %1394 = vmatpush1.bf16.msra.mxu0 %v1350
        %1395 = vmatprep.subr.bf16.mxu0 0
        %1396 = vmatpush1.bf16.msra.mxu0 %v1351
        %1397 = vmatprep.subr.bf16.mxu0 0
        %1398 = vmatpush1.bf16.msra.mxu0 %v1352
        %1399 = vmatprep.subr.bf16.mxu0 0
        %1400 = vmatpush1.bf16.msra.mxu0 %v1353
        %1401 = vmatprep.subr.bf16.mxu0 0
        %1402 = vmatpush1.bf16.msra.mxu0 %v1354
        %1403 = vmatprep.mubr.bf16.mxu0 %v1235
        %1404 = vmatmul.mubr.bf16.gmra.mrb[0].mxu0 %v1234
        %v1405 = vpop.f32.mrb[0].mxu0
        %v1406 = vadd.f32 %v1273, %v1405
        %v1407 = vpop.f32.mrb[0].mxu0
        %v1408 = vpop.f32.mrb[0].mxu0
        %v1409 = vadd.f32 %v1273, %v1408
        %v1410 = vpop.f32.mrb[0].mxu0
        %1411 = vdwg.mxu0
        %v1412 = vmax.f32 %v1406, 0.0
        %v1413 = vmax.f32 %v1409, 0.0
        %v1414 = vld [vmem:[#allocation2 + $0x8] sm:$0xff]
        %v1415 = vld [vmem:[#allocation2 + $0x10] sm:$0xff]
        %v1416 = vadd.f32 %v1412, %v1414
        %v1417 = vadd.f32 %v1413, %v1415
        %v1418 = vmax.f32 %v1416, 0.0
        %v1419 = vmax.f32 %v1417, 0.0
        %1420 = vst [vmem:[#allocation2 + $0x8] sm:$0xff] %v1418
        %1421 = vst [vmem:[#allocation2 + $0x10] sm:$0xff] %v1419
        %v1422 = vld [vmem:[#allocation2 + $0x14] sm:$0xf]
        %v1423 = vpack.c.bf16 %v1422, %v1422
        %v1424 = vld [vmem:[#allocation15] sm:$0xf]
        %v1425 = vld [vmem:[#allocation15 + $0x4] sm:$0xf]
        %v1426 = vld [vmem:[#allocation15 + $0x8] sm:$0xf]
        %v1427 = vld [vmem:[#allocation15 + $0xc] sm:$0xf]
        %v1428 = vld [vmem:[#allocation15 + $0x10] sm:$0xf]
        %v1429 = vld [vmem:[#allocation15 + $0x14] sm:$0xf]
        %v1430 = vld [vmem:[#allocation15 + $0x18] sm:$0xf]
        %v1431 = vld [vmem:[#allocation15 + $0x1c] sm:$0xf]
        %v1432 = vld [vmem:[#allocation15 + $0x20] sm:$0xf]
        %v1433 = vld [vmem:[#allocation15 + $0x24] sm:$0xf]
        %v1434 = vld [vmem:[#allocation15 + $0x28] sm:$0xf]
        %v1435 = vld [vmem:[#allocation15 + $0x2c] sm:$0xf]
        %v1436 = vld [vmem:[#allocation15 + $0x30] sm:$0xf]
        %v1437 = vld [vmem:[#allocation15 + $0x34] sm:$0xf]
        %v1438 = vld [vmem:[#allocation15 + $0x38] sm:$0xf]
        %v1439 = vld [vmem:[#allocation15 + $0x3c] sm:$0xf]
        %v1440 = vld [vmem:[%s12] sm:$0x1]
        %v1442 = vlaneseq
        %v1443 = vshrl.u32 %v1442, 7
        %v1444 = vsub.s32 0, %v1443
        %v1445 = vrot.slane %v1440, %v1444
        %v1463 = vunpack.c.l.b16 %v1424
        %v1464 = vunpack.c.l.b16 %v1425
        %v1465 = vunpack.c.l.b16 %v1426
        %v1466 = vunpack.c.l.b16 %v1427
        %v1467 = vunpack.c.l.b16 %v1428
        %v1468 = vunpack.c.l.b16 %v1429
        %v1469 = vunpack.c.l.b16 %v1430
        %v1470 = vunpack.c.l.b16 %v1431
        %v1471 = vunpack.c.l.b16 %v1432
        %v1472 = vunpack.c.l.b16 %v1433
        %v1473 = vunpack.c.l.b16 %v1434
        %v1474 = vunpack.c.l.b16 %v1435
        %v1475 = vunpack.c.l.b16 %v1436
        %v1476 = vunpack.c.l.b16 %v1437
        %v1477 = vunpack.c.l.b16 %v1438
        %v1478 = vunpack.c.l.b16 %v1439
        %v1479 = vpack.c.b16 %v1464, %v1463
        %v1480 = vpack.c.b16 %v1466, %v1465
        %v1481 = vpack.c.b16 %v1468, %v1467
        %v1482 = vpack.c.b16 %v1470, %v1469
        %v1483 = vpack.c.b16 %v1472, %v1471
        %v1484 = vpack.c.b16 %v1474, %v1473
        %v1485 = vpack.c.b16 %v1476, %v1475
        %v1486 = vpack.c.b16 %v1478, %v1477
        %1495 = vmatprep.subr.bf16.mxu0 0
        %1496 = vmatpush1.bf16.msra.mxu0 %v1479
        %1497 = vmatprep.subr.bf16.mxu0 0
        %1498 = vmatpush1.bf16.msra.mxu0 %v1480
        %1499 = vmatprep.subr.bf16.mxu0 0
        %1500 = vmatpush1.bf16.msra.mxu0 %v1481
        %1501 = vmatprep.subr.bf16.mxu0 0
        %1502 = vmatpush1.bf16.msra.mxu0 %v1482
        %1503 = vmatprep.subr.bf16.mxu0 0
        %1504 = vmatpush1.bf16.msra.mxu0 %v1483
        %1505 = vmatprep.subr.bf16.mxu0 0
        %1506 = vmatpush1.bf16.msra.mxu0 %v1484
        %1507 = vmatprep.subr.bf16.mxu0 0
        %1508 = vmatpush1.bf16.msra.mxu0 %v1485
        %1509 = vmatprep.subr.bf16.mxu0 0
        %1510 = vmatpush1.bf16.msra.mxu0 %v1486
        %1511 = vmatprep.subr.bf16.mxu0 0
        %1512 = vmatpush1.bf16.msra.mxu0 0
        %1513 = vmatprep.subr.bf16.mxu0 0
        %1514 = vmatpush1.bf16.msra.mxu0 0
        %1515 = vmatprep.subr.bf16.mxu0 0
        %1516 = vmatpush1.bf16.msra.mxu0 0
        %1517 = vmatprep.subr.bf16.mxu0 0
        %1518 = vmatpush1.bf16.msra.mxu0 0
        %1519 = vmatprep.subr.bf16.mxu0 0
        %1520 = vmatpush1.bf16.msra.mxu0 0
        %1521 = vmatprep.subr.bf16.mxu0 0
        %1522 = vmatpush1.bf16.msra.mxu0 0
        %1523 = vmatprep.subr.bf16.mxu0 0
        %1524 = vmatpush1.bf16.msra.mxu0 0
        %1525 = vmatprep.subr.bf16.mxu0 0
        %1526 = vmatpush1.bf16.msra.mxu0 0
        %1527 = vmatprep.mubr.bf16.mxu0 0
        %1528 = vmatmul.mubr.bf16.gmra.mrb[0].mxu0 %v1423
        %v1529 = vpop.f32.mrb[0].mxu0
        %v1530 = vadd.f32 %v1445, %v1529
        %v1531 = vpop.f32.mrb[0].mxu0
        %v1532 = vpop.f32.mrb[0].mxu0
        %v1533 = vpop.f32.mrb[0].mxu0
        %1534 = vdwg.mxu0
        %1535 = vst [vmem:[%s545] sm:$0xf] %v1530
        %s1536 = sand.u32 %s319, 1
        %s1537 = scalar_lea.sflag [#allocation6], %s1536
        %s1538 = sand.u32 %s319, 1
        %s1539 = smul.addr %s1538, 4
        %s1540 = scalar_lea.vmem [#allocation16], %s1539
        // Predicated region
        $region101: #{tpu_custom_call.1} parent=71 // pred_check
          %p1541 = pneg %p329
        $region102: #{tpu_custom_call.1} parent=71 // pred_check_branch
          %1543 = sbr.rel (%p1541) target = $region104
        $region103: #{tpu_custom_call.1} parent=71 // pred_region
          %s1545 = ssub.s32 64, 64
          %1546 = vsyncadd %s1537, %s1545
          %s1547 = smul.addr %s33, 64
          %s1548 = scalar_lea.hbm %s13, %s1547
          %s1550 = sshll.u32 %s1540, 4
          %s1551 = int_to_ptr.vmem [resolvable:$true] %s1550
          %1553 = dma.vmem_to_hbm [thread:$0]  %s1551, 64, %s1548, %s1537
        $region104: #{tpu_custom_call.1} parent=71 // pred_fallthru
          _
      $region72: #{tpu_custom_call.1} parent=5 // pred_fallthru
        _
      %p1554 = scmp.le.s32.totalorder 2, %s28
      // Predicated region
      $region105: #{tpu_custom_call.1} parent=5 // pred_check
        %p1555 = pneg %p1554
      $region106: #{tpu_custom_call.1} parent=5 // pred_check_branch
        %1557 = sbr.rel (%p1555) target = $region108
      $region107: #{tpu_custom_call.1} parent=5 // pred_region
        %s1558 = ssub.s32 %s28, 2
        // Predicated region
        $region109: #{tpu_custom_call.1} parent=107 // pred_check
          %p1559 = pneg %p335
        $region110: #{tpu_custom_call.1} parent=107 // pred_check_branch
          %1561 = sbr.rel (%p1559) target = $region112
        $region111: #{tpu_custom_call.1} parent=107 // pred_region
          %s1562 = sand.u32 %s320, 1
          %s1563 = scalar_lea.sflag [#allocation6], %s1562
          %s1564 = sand.u32 %s320, 1
          %s1565 = smul.addr %s1564, 4
          %s1566 = scalar_lea.vmem [#allocation16], %s1565
          %1567 = dma.done %s1563, 64
        $region112: #{tpu_custom_call.1} parent=107 // pred_fallthru
          _
      $region108: #{tpu_custom_call.1} parent=5 // pred_fallthru
        _
    $region6: #{tpu_custom_call.1} parent=1 // loop_footer
      %s32 = sadd.s32 1, %s28
    $region7: #{tpu_custom_call.1} parent=1 // loop_footer_branch
      %27 = sbr.rel target = $region3
    $region8: #{tpu_custom_call.1} parent=1 // loop_exit
      _
    %1568 = vsyncpa [#allocation5], 1
    %s1569 = scalar_lea.sflag [#allocation5], 1
    %1570 = vsyncpa %s1569, 1
    %1571 = vsyncpa [#allocation8], 1
    %1572 = vsyncpa [#allocation11], 1
    %1573 = vsyncpa [#allocation14], 1
    %1574 = vsyncpa [#allocation6], 1
    %s1575 = scalar_lea.sflag [#allocation6], 1
    %1576 = vsyncpa %s1575, 1

</llo_original>
